<compile_context>
chip_gen: v6e
topology: v6e:2x2x1
jax: 0.10.0
libtpu: 0.0.40
codegen_flags: <defaults>
</compile_context>

<pallas_src>
import functools
import math

import jax
import jax.numpy as jnp
from jax import lax
from jax.experimental import pallas as pl
from jax.experimental.pallas import tpu as pltpu

EPS = 1e-5          # nn.LayerNorm default eps
NEG_INF = -1e30


def _ceil_div(a, b):
    return -(-a // b)


def _round_up(x, m):
    return _ceil_div(x, m) * m


# ----------------------------------------------------------------------------- kernel
def _sasrec_kernel(*refs, n_heads, block_b, seq_len, d_model, causal, has_mask):
    """One grid step processes `block_b` sequences of length `seq_len` (padded model dim)."""
    if has_mask:
        am_ref = refs[0]
        refs = refs[1:]
    (kpm_ref, x_ref, ln_ref, wq_ref, wkv_ref, wo_ref, wff_ref,
     bqkv_ref, bout_ref, o_ref) = refs

    f32 = jnp.float32
    S = seq_len
    H = n_heads
    D = d_model                      # real (unpadded) model dim -> LayerNorm statistics
    Dp = x_ref.shape[-1]             # padded model dim (multiple of 128)
    DQ = wq_ref.shape[-1]            # padded head-concat dim = H * hd_p (multiple of 128)
    hd_p = DQ // H
    N = block_b * S                  # rows fed to every projection matmul
    cd = wq_ref.dtype                # matmul operand dtype (f32 or bf16)
    inv_d = f32(1.0 / D)

    def layernorm(v, g, b):
        # padded columns of v are exactly zero, so sums over Dp == sums over the real D columns
        mu = jnp.sum(v, axis=-1, keepdims=True) * inv_d
        var = jnp.sum(v * v, axis=-1, keepdims=True) * inv_d - mu * mu
        return (v - mu) * lax.rsqrt(var + EPS) * g + b

    x = x_ref[...].reshape(N, Dp).astype(f32)

    ln = ln_ref[...].astype(f32)                     # (4, Dp): gq, bq, gff, bff
    gq, bq, gff, bff = ln[0:1], ln[1:2], ln[2:3], ln[3:4]
    bqkv = bqkv_ref[...].astype(f32)                 # (3, DQ): bq_p, bk_p, bv_p (head-block padded)
    bq_p, bk_p, bv_p = bqkv[0:1], bqkv[1:2], bqkv[2:3]
    bout = bout_ref[...].astype(f32)                 # (3, Dp): bo_p, b1, b2
    bo_p, b1, b2 = bout[0:1], bout[1:2], bout[2:3]

    # ---- q = LayerNorm(seqs) ----
    qn = layernorm(x, gq, bq)                                                # (N, Dp)

    # ---- projections (1/sqrt(head_dim) pre-folded into wq / bq_p host-side) ----
    q_p = jnp.dot(qn.astype(cd), wq_ref[...], preferred_element_type=f32) + bq_p    # (N, DQ)
    kv = jnp.dot(x.astype(cd), wkv_ref[...], preferred_element_type=f32)            # (N, 2*DQ)
    k_p = kv[:, :DQ] + bk_p                          # lane-aligned split (DQ % 128 == 0)
    v_p = kv[:, DQ:] + bv_p

    # ---- head split: single reshape + transpose per tensor (no per-head slicing loop) ----
    def to_heads(t):                                 # (N, DQ) -> (block_b*H, S, hd_p)
        t4 = t.reshape(block_b, S, H, hd_p)
        return jnp.transpose(t4, (0, 2, 1, 3)).reshape(block_b * H, S, hd_p)

    qh = to_heads(q_p.astype(cd))
    kh = to_heads(k_p.astype(cd))
    vh = to_heads(v_p.astype(cd))

    # ---- head-batched attention ----
    scores = jnp.einsum("bqd,bkd->bqk", qh, kh,
                        preferred_element_type=f32)                          # (block_b*H, S, S)
    scores = scores.reshape(block_b, H, S, S)

    if causal:
        row = lax.broadcasted_iota(jnp.int32, (S, S), 0)
        col = lax.broadcasted_iota(jnp.int32, (S, S), 1)
        cmask = jnp.where(col > row, f32(NEG_INF), f32(0.0))
        scores = scores + cmask[None, None, :, :]
    elif has_mask:
        scores = scores + am_ref[...].astype(f32)[None, None, :, :]

    kpm = kpm_ref[...].astype(f32)                                           # (block_b, 1, S)
    scores = scores + kpm[:, :, None, :]

    # flash-style: normalize AFTER the P.V matmul (scale the small context, not the S*S probs)
    m = jnp.max(scores, axis=-1, keepdims=True)
    p = jnp.exp(scores - m)
    l = jnp.sum(p, axis=-1, keepdims=True)                                   # (block_b, H, S, 1)
    p = p.reshape(block_b * H, S, S)

    ctx = jnp.einsum("bqk,bkd->bqd", p.astype(cd), vh,
                     preferred_element_type=f32)                             # (block_b*H, S, hd_p)
    ctx = ctx * pl.reciprocal(l.reshape(block_b * H, S, 1), approx=True)

    # merge heads: one transpose + reshape, then a single full-width out projection
    ctx = jnp.transpose(ctx.reshape(block_b, H, S, hd_p), (0, 2, 1, 3)).reshape(N, DQ)
    attn = jnp.dot(ctx.astype(cd), wo_ref[...], preferred_element_type=f32) + bo_p  # (N, Dp)

    # ---- residual + feed forward ----
    seqs2 = qn + attn
    ff_in = layernorm(seqs2, gff, bff)
    h1 = jnp.maximum(
        jnp.dot(ff_in.astype(cd), wff_ref[0], preferred_element_type=f32) + b1, 0.0)
    out = jnp.dot(h1.astype(cd), wff_ref[1], preferred_element_type=f32) + b2 + ff_in

    o_ref[...] = out.reshape(block_b, S, Dp).astype(o_ref.dtype)


# ----------------------------------------------------------------------------- host-side helpers
def _vmem_estimate(bb, S, Dp, DQ, H, in_itemsize, w_itemsize):
    rows = bb * S
    io = 2 * 2 * rows * Dp * in_itemsize                              # seqs in + out, double-buffered
    wts = 2 * w_itemsize * (Dp * DQ + Dp * 2 * DQ + DQ * Dp + 2 * Dp * Dp)
    small = 2 * 4 * (4 * Dp + 3 * DQ + 3 * Dp + bb * S + S * S)
    attn = 3 * 4 * bb * H * S * S                                     # scores / exp / probs (f32)
    acts = 14 * 4 * rows * max(Dp, DQ)                                # projections / heads / ctx / ffn
    return io + wts + small + attn + acts


def _choose_block_b(B, S, Dp, DQ, H, *, target_rows, vmem_budget_bytes,
                    min_grid_steps, in_itemsize, w_itemsize):
    bb = max(1, min(B, _ceil_div(target_rows, S)))
    if min_grid_steps > 1 and B >= min_grid_steps:
        bb = min(bb, max(1, B // min_grid_steps))     # keep both v7x TensorCores busy
    while bb > 1 and _vmem_estimate(bb, S, Dp, DQ, H, in_itemsize, w_itemsize) > vmem_budget_bytes:
        bb //= 2
    # prefer a block_b dividing B (no host-side batch-padding copy), unless it halves the block
    largest_div = max(d for d in range(1, bb + 1) if B % d == 0)
    if 2 * largest_div >= bb:
        bb = largest_div
    return bb


def _pack_params(params, D, H, Dp, hd_p, compute_dtype):
    """Zero-pad / re-order weights host-side so the kernel is fully lane-dense."""
    hd = D // H
    DQ = H * hd_p
    f32 = jnp.float32
    scale = 1.0 / math.sqrt(hd)

    def pad_vec(v):                      # (D,) -> (Dp,)
        return jnp.zeros((Dp,), f32).at[:D].set(v.astype(f32))

    def pad_head_cols(w):                # (D, D) -> (Dp, DQ), per-head padded output columns
        w3 = w.astype(f32).reshape(D, H, hd)
        return jnp.zeros((Dp, H, hd_p), f32).at[:D, :, :hd].set(w3).reshape(Dp, DQ)

    def pad_head_vec(b):                 # (D,) -> (DQ,)
        b2 = b.astype(f32).reshape(H, hd)
        return jnp.zeros((H, hd_p), f32).at[:, :hd].set(b2).reshape(DQ)

    def pad_head_rows(w):                # (D, D) -> (DQ, Dp), per-head padded input rows
        w3 = w.astype(f32).reshape(H, hd, D)
        return jnp.zeros((H, hd_p, Dp), f32).at[:, :hd, :D].set(w3).reshape(DQ, Dp)

    def pad_plain(w):                    # (D, D) -> (Dp, Dp)
        return jnp.zeros((Dp, Dp), f32).at[:D, :D].set(w.astype(f32))

    ln = jnp.stack([pad_vec(params["gq"]), pad_vec(params["bq"]),
                    pad_vec(params["gff"]), pad_vec(params["bff"])])                    # (4, Dp)
    wq = (pad_head_cols(params["wq_t"]) * scale).astype(compute_dtype)                  # (Dp, DQ)
    wkv = jnp.concatenate([pad_head_cols(params["wk_t"]),
                           pad_head_cols(params["wv_t"])], axis=1).astype(compute_dtype)  # (Dp, 2DQ)
    wo = pad_head_rows(params["wo_t"]).astype(compute_dtype)                            # (DQ, Dp)
    wff = jnp.stack([pad_plain(params["w1_t"]),
                     pad_plain(params["w2_t"])]).astype(compute_dtype)                  # (2, Dp, Dp)
    bqkv = jnp.stack([pad_head_vec(params["bq_p"]) * scale,
                      pad_head_vec(params["bk_p"]),
                      pad_head_vec(params["bv_p"])])                                    # (3, DQ)
    bout = jnp.stack([pad_vec(params["bo_p"]), pad_vec(params["b1"]),
                      pad_vec(params["b2"])])                                           # (3, Dp)
    return ln, wq, wkv, wo, wff, bqkv, bout


def _resident_spec(a):
    nd = a.ndim
    return pl.BlockSpec(a.shape, lambda i, _nd=nd: (0,) * _nd)


# ----------------------------------------------------------------------------- public wrapper
def sasrec_transformer_layer(seqs, attn_mask_add, kpm_add, params, n_heads, *,
                             causal=False, compute_dtype=jnp.float32, block_b=None,
                             vmem_limit_bytes=None, target_rows=512,
                             vmem_budget_bytes=30 << 20, min_grid_steps=2):
    """SASRec transformer block forward (eval mode).

    seqs          : (B, S, D) float array.
    attn_mask_add : (S, S) additive float mask, or None.
    kpm_add       : (B, S) additive float key-padding mask, or None.
    causal        : if True, ignore attn_mask_add and build the causal mask in-kernel.
    params        : dict of layer parameters (weights pre-transposed: x @ W_t == x @ W.T).
    compute_dtype : dtype of MXU operands (bf16 recommended on v6e / v7x; keep f32 on v5e).
    """
    B, S, D = seqs.shape
    assert D % n_heads == 0
    hd = D // n_heads
    f32 = jnp.float32

    # padded (lane-dense) dims
    Dp = _round_up(D, 128)
    hd_p = Dp // n_heads if Dp % n_heads == 0 else _round_up(hd, 128)
    DQ = n_heads * hd_p

    has_mask = (not causal) and (attn_mask_add is not None)

    in_itemsize = jnp.dtype(seqs.dtype).itemsize
    w_itemsize = jnp.dtype(compute_dtype).itemsize
    if block_b is None:
        block_b = _choose_block_b(B, S, Dp, DQ, n_heads,
                                  target_rows=target_rows,
                                  vmem_budget_bytes=vmem_budget_bytes,
                                  min_grid_steps=min_grid_steps,
                                  in_itemsize=in_itemsize, w_itemsize=w_itemsize)
    if vmem_limit_bytes is None:
        est = _vmem_estimate(block_b, S, Dp, DQ, n_heads, in_itemsize, w_itemsize)
        vmem_limit_bytes = int(min(max(int(1.6 * est), 32 << 20), 52 << 20))

    n_blocks = _ceil_div(B, block_b)
    Bp = n_blocks * block_b
    pad_b, pad_d = Bp - B, Dp - D

    seqs_p = seqs if (pad_b == 0 and pad_d == 0) else jnp.pad(
        seqs, ((0, pad_b), (0, 0), (0, pad_d)))
    if kpm_add is None:
        kpm_p = jnp.zeros((Bp, 1, S), f32)
    else:
        kpm_p = kpm_add.astype(f32).reshape(B, 1, S)
        if pad_b:
            kpm_p = jnp.pad(kpm_p, ((0, pad_b), (0, 0), (0, 0)))

    ln, wq, wkv, wo, wff, bqkv, bout = _pack_params(params, D, n_heads, Dp, hd_p, compute_dtype)

    in_specs = []
    inputs = []
    if has_mask:
        in_specs.append(pl.BlockSpec((S, S), lambda i: (0, 0)))
        inputs.append(attn_mask_add.astype(f32))
    in_specs += [
        pl.BlockSpec((block_b, 1, S), lambda i: (i, 0, 0)),      # key padding mask
        pl.BlockSpec((block_b, S, Dp), lambda i: (i, 0, 0)),     # seqs (lane-dense Dp)
        _resident_spec(ln), _resident_spec(wq), _resident_spec(wkv),
        _resident_spec(wo), _resident_spec(wff),
        _resident_spec(bqkv), _resident_spec(bout),
    ]
    inputs += [kpm_p, seqs_p, ln, wq, wkv, wo, wff, bqkv, bout]

    kernel = functools.partial(
        _sasrec_kernel, n_heads=n_heads, block_b=block_b, seq_len=S,
        d_model=D, causal=causal, has_mask=has_mask)

    out = pl.pallas_call(
        kernel,
        out_shape=jax.ShapeDtypeStruct((Bp, S, Dp), seqs.dtype),
        grid_spec=pltpu.PrefetchScalarGridSpec(
            num_scalar_prefetch=0,
            grid=(Bp // block_b,),
            in_specs=in_specs,
            out_specs=pl.BlockSpec((block_b, S, Dp), lambda i: (i, 0, 0)),
        ),
        compiler_params=pltpu.CompilerParams(
            dimension_semantics=("parallel",),    # independent batch blocks (v7x: both TCs)
            vmem_limit_bytes=vmem_limit_bytes),
    )(*inputs)

    if pad_b or pad_d:
        out = out[:B, :, :D]
    return out


# ----------------------------- pure-JAX reference -----------------------------
def _layernorm_ref(v, g, b):
    mu = jnp.mean(v, axis=-1, keepdims=True)
    var = jnp.mean((v - mu) ** 2, axis=-1, keepdims=True)
    return (v - mu) * lax.rsqrt(var + EPS) * g + b


def reference(seqs, attn_mask_add, kpm_add, params, n_heads):
    B, S, D = seqs.shape
    hd = D // n_heads
    q = _layernorm_ref(seqs, params["gq"], params["bq"])
    Q = q @ params["wq_t"] + params["bq_p"]
    K = seqs @ params["wk_t"] + params["bk_p"]
    V = seqs @ params["wv_t"] + params["bv_p"]
    Qh = Q.reshape(B, S, n_heads, hd).transpose(0, 2, 1, 3)
    Kh = K.reshape(B, S, n_heads, hd).transpose(0, 2, 1, 3)
    Vh = V.reshape(B, S, n_heads, hd).transpose(0, 2, 1, 3)
    scores = jnp.einsum("bhqd,bhkd->bhqk", Qh, Kh) / jnp.sqrt(jnp.float32(hd))
    scores = scores + attn_mask_add[None, None] + kpm_add[:, None, None, :]
    p = jax.nn.softmax(scores, axis=-1)
    ctx = jnp.einsum("bhqk,bhkd->bhqd", p, Vh).transpose(0, 2, 1, 3).reshape(B, S, D)
    mha = ctx @ params["wo_t"] + params["bo_p"]
    seqs2 = q + mha
    ff_in = _layernorm_ref(seqs2, params["gff"], params["bff"])
    h1 = jnp.maximum(ff_in @ params["w1_t"] + params["b1"], 0.0)
    out2 = h1 @ params["w2_t"] + params["b2"]
    return out2 + ff_in


if __name__ == "__main__":
    B, S, D, H = 2, 8, 32, 2   # batch, seq_len, n_factors, n_heads

    key = jax.random.PRNGKey(0)
    ks = jax.random.split(key, 16)

    def w(k, shape, scale=0.05):
        return (scale * jax.random.normal(k, shape)).astype(jnp.float32)

    params = {
        # LayerNorm before attention (q_layer_norm)
        "gq": jnp.ones((D,), jnp.float32),
        "bq": jnp.zeros((D,), jnp.float32),
        # MHA in_proj split into q/k/v; weights stored transposed (x @ W.T -> x @ W_t)
        "wq_t": w(ks[0], (D, D)), "bq_p": w(ks[1], (D,)),
        "wk_t": w(ks[2], (D, D)), "bk_p": w(ks[3], (D,)),
        "wv_t": w(ks[4], (D, D)), "bv_p": w(ks[5], (D,)),
        # MHA out_proj
        "wo_t": w(ks[6], (D, D)), "bo_p": w(ks[7], (D,)),
        # LayerNorm before feed forward (ff_layer_norm)
        "gff": jnp.ones((D,), jnp.float32),
        "bff": jnp.zeros((D,), jnp.float32),
        # PointWiseFeedForward: Linear(D,D) -> ReLU -> Linear(D,D)
        "w1_t": w(ks[8], (D, D)), "b1": w(ks[9], (D,)),
        "w2_t": w(ks[10], (D, D)), "b2": w(ks[11], (D,)),
    }

    seqs = jax.random.normal(ks[12], (B, S, D), jnp.float32)

    # causal additive attention mask (upper triangle masked) + key-padding mask
    neg = jnp.float32(NEG_INF)
    attn_mask_add = jnp.where(
        jnp.triu(jnp.ones((S, S), jnp.bool_), k=1), neg, jnp.float32(0.0))
    kpm_bool = jnp.zeros((B, S), jnp.bool_).at[1, S - 1].set(True)
    kpm_add = jnp.where(kpm_bool, neg, jnp.float32(0.0))

    ref = reference(seqs, attn_mask_add, kpm_add, params, H)

    # 1) causal mask generated in-kernel (no (S, S) HBM mask), f32 MXU operands
    out_causal = sasrec_transformer_layer(seqs, None, kpm_add, params, H, causal=True)
    # 2) explicit additive attention mask streamed from HBM
    out_masked = sasrec_transformer_layer(seqs, attn_mask_add, kpm_add, params, H)
    # 3) bf16 MXU operands (v6e / v7x fast path), f32 accumulation
    out_bf16 = sasrec_transformer_layer(seqs, None, kpm_add, params, H, causal=True,
                                        compute_dtype=jnp.bfloat16)
    jax.block_until_ready((out_causal, out_masked, out_bf16))

    for o in (out_causal, out_masked, out_bf16):
        assert o.shape == (B, S, D)
        assert bool(jnp.all(jnp.isfinite(o)))
    assert bool(jnp.max(jnp.abs(out_causal - ref)) < 3e-3)
    assert bool(jnp.max(jnp.abs(out_masked - ref)) < 3e-3)
    assert bool(jnp.max(jnp.abs(out_bf16 - ref)) < 5e-2)

    print("KERNEL_OK")
</pallas_src>

<mosaic_0001>
module attributes {stable_mosaic.version = 11 : i64} {
  func.func @_sasrec_kernel(%arg0: i32, %arg1: memref<1x1x8xf32, #tpu.memory_space<vmem>>, %arg2: memref<1x8x128xf32, #tpu.memory_space<vmem>>, %arg3: memref<4x128xf32, #tpu.memory_space<vmem>>, %arg4: memref<128x128xf32, #tpu.memory_space<vmem>>, %arg5: memref<128x256xf32, #tpu.memory_space<vmem>>, %arg6: memref<128x128xf32, #tpu.memory_space<vmem>>, %arg7: memref<2x128x128xf32, #tpu.memory_space<vmem>>, %arg8: memref<3x128xf32, #tpu.memory_space<vmem>>, %arg9: memref<3x128xf32, #tpu.memory_space<vmem>>, %arg10: memref<1x8x128xf32, #tpu.memory_space<vmem>>) attributes {dimension_semantics = [#tpu.dimension_semantics<parallel>], iteration_bounds = array<i64: 2>, scalar_prefetch = 0 : i64, scratch_operands = 0 : i64, tpu.core_type = #tpu.core_type<tc>, window_params = [{transform_indices = @transform_0, window_bounds = array<i64: 1, 1, 8>}, {transform_indices = @transform_1, window_bounds = array<i64: 1, 8, 128>}, {pipeline_mode = #tpu.pipeline_mode<synchronous>, transform_indices = @transform_2, window_bounds = array<i64: 4, 128>}, {pipeline_mode = #tpu.pipeline_mode<synchronous>, transform_indices = @transform_3, window_bounds = array<i64: 128, 128>}, {pipeline_mode = #tpu.pipeline_mode<synchronous>, transform_indices = @transform_4, window_bounds = array<i64: 128, 256>}, {pipeline_mode = #tpu.pipeline_mode<synchronous>, transform_indices = @transform_5, window_bounds = array<i64: 128, 128>}, {pipeline_mode = #tpu.pipeline_mode<synchronous>, transform_indices = @transform_6, window_bounds = array<i64: 2, 128, 128>}, {pipeline_mode = #tpu.pipeline_mode<synchronous>, transform_indices = @transform_7, window_bounds = array<i64: 3, 128>}, {pipeline_mode = #tpu.pipeline_mode<synchronous>, transform_indices = @transform_8, window_bounds = array<i64: 3, 128>}, {transform_indices = @transform_9, window_bounds = array<i64: 1, 8, 128>}]} {
    %c0 = arith.constant 0 : index
    %c0_0 = arith.constant 0 : index
    %c0_1 = arith.constant 0 : index
    %0 = vector.load %arg2[%c0, %c0_0, %c0_1] : memref<1x8x128xf32, #tpu.memory_space<vmem>>, vector<1x8x128xf32>
    %1 = vector.shape_cast %0 : vector<1x8x128xf32> to vector<8x128xf32>
    %c0_2 = arith.constant 0 : index
    %c0_3 = arith.constant 0 : index
    %2 = vector.load %arg3[%c0_2, %c0_3] : memref<4x128xf32, #tpu.memory_space<vmem>>, vector<4x128xf32>
    %3 = vector.extract_strided_slice %2 {offsets = [0, 0], sizes = [1, 128], strides = [1, 1]} : vector<4x128xf32> to vector<1x128xf32>
    %4 = vector.extract_strided_slice %2 {offsets = [1, 0], sizes = [1, 128], strides = [1, 1]} : vector<4x128xf32> to vector<1x128xf32>
    %5 = vector.extract_strided_slice %2 {offsets = [2, 0], sizes = [1, 128], strides = [1, 1]} : vector<4x128xf32> to vector<1x128xf32>
    %6 = vector.extract_strided_slice %2 {offsets = [3, 0], sizes = [1, 128], strides = [1, 1]} : vector<4x128xf32> to vector<1x128xf32>
    %c0_4 = arith.constant 0 : index
    %c0_5 = arith.constant 0 : index
    %7 = vector.load %arg8[%c0_4, %c0_5] : memref<3x128xf32, #tpu.memory_space<vmem>>, vector<3x128xf32>
    %8 = vector.extract_strided_slice %7 {offsets = [0, 0], sizes = [1, 128], strides = [1, 1]} : vector<3x128xf32> to vector<1x128xf32>
    %9 = vector.extract_strided_slice %7 {offsets = [1, 0], sizes = [1, 128], strides = [1, 1]} : vector<3x128xf32> to vector<1x128xf32>
    %10 = vector.extract_strided_slice %7 {offsets = [2, 0], sizes = [1, 128], strides = [1, 1]} : vector<3x128xf32> to vector<1x128xf32>
    %c0_6 = arith.constant 0 : index
    %c0_7 = arith.constant 0 : index
    %11 = vector.load %arg9[%c0_6, %c0_7] : memref<3x128xf32, #tpu.memory_space<vmem>>, vector<3x128xf32>
    %12 = vector.extract_strided_slice %11 {offsets = [0, 0], sizes = [1, 128], strides = [1, 1]} : vector<3x128xf32> to vector<1x128xf32>
    %13 = vector.extract_strided_slice %11 {offsets = [1, 0], sizes = [1, 128], strides = [1, 1]} : vector<3x128xf32> to vector<1x128xf32>
    %14 = vector.extract_strided_slice %11 {offsets = [2, 0], sizes = [1, 128], strides = [1, 1]} : vector<3x128xf32> to vector<1x128xf32>
    %cst = arith.constant dense<0.000000e+00> : vector<8xf32>
    %15 = vector.multi_reduction <add>, %1, %cst [1] : vector<8x128xf32> to vector<8xf32>
    %16 = vector.shape_cast %15 : vector<8xf32> to vector<8x1xf32>
    %cst_8 = arith.constant 3.125000e-02 : f32
    %17 = vector.broadcast %cst_8 : f32 to vector<8x1xf32>
    %18 = arith.mulf %16, %17 : vector<8x1xf32>
    %19 = arith.mulf %1, %1 : vector<8x128xf32>
    %cst_9 = arith.constant dense<0.000000e+00> : vector<8xf32>
    %20 = vector.multi_reduction <add>, %19, %cst_9 [1] : vector<8x128xf32> to vector<8xf32>
    %21 = vector.shape_cast %20 : vector<8xf32> to vector<8x1xf32>
    %cst_10 = arith.constant 3.125000e-02 : f32
    %22 = vector.broadcast %cst_10 : f32 to vector<8x1xf32>
    %23 = arith.mulf %21, %22 : vector<8x1xf32>
    %24 = arith.mulf %18, %18 : vector<8x1xf32>
    %25 = arith.subf %23, %24 : vector<8x1xf32>
    %26 = vector.broadcast %18 : vector<8x1xf32> to vector<8x128xf32>
    %27 = arith.subf %1, %26 : vector<8x128xf32>
    %cst_11 = arith.constant 9.99999974E-6 : f32
    %28 = vector.broadcast %cst_11 : f32 to vector<8x1xf32>
    %29 = arith.addf %25, %28 : vector<8x1xf32>
    %30 = math.rsqrt %29 : vector<8x1xf32>
    %31 = vector.broadcast %30 : vector<8x1xf32> to vector<8x128xf32>
    %32 = arith.mulf %27, %31 : vector<8x128xf32>
    %33 = vector.broadcast %3 : vector<1x128xf32> to vector<8x128xf32>
    %34 = arith.mulf %32, %33 : vector<8x128xf32>
    %35 = vector.broadcast %4 : vector<1x128xf32> to vector<8x128xf32>
    %36 = arith.addf %34, %35 : vector<8x128xf32>
    %c0_12 = arith.constant 0 : index
    %c0_13 = arith.constant 0 : index
    %37 = vector.load %arg4[%c0_12, %c0_13] : memref<128x128xf32, #tpu.memory_space<vmem>>, vector<128x128xf32>
    %cst_14 = arith.constant dense<0.000000e+00> : vector<8x128xf32>
    %38 = tpu.matmul %36, %37, %cst_14 {dimension_numbers = #tpu.dot_dimension_numbers<[1], [0], [0], [1], [0, 0, 1, 1], [], []>} : vector<8x128xf32>, vector<128x128xf32>, vector<8x128xf32> -> vector<8x128xf32>
    %39 = vector.broadcast %8 : vector<1x128xf32> to vector<8x128xf32>
    %40 = arith.addf %38, %39 : vector<8x128xf32>
    %c0_15 = arith.constant 0 : index
    %c0_16 = arith.constant 0 : index
    %41 = vector.load %arg5[%c0_15, %c0_16] : memref<128x256xf32, #tpu.memory_space<vmem>>, vector<128x256xf32>
    %cst_17 = arith.constant dense<0.000000e+00> : vector<8x256xf32>
    %42 = tpu.matmul %1, %41, %cst_17 {dimension_numbers = #tpu.dot_dimension_numbers<[1], [0], [0], [1], [0, 0, 1, 1], [], []>} : vector<8x128xf32>, vector<128x256xf32>, vector<8x256xf32> -> vector<8x256xf32>
    %43 = vector.extract_strided_slice %42 {offsets = [0, 0], sizes = [8, 128], strides = [1, 1]} : vector<8x256xf32> to vector<8x128xf32>
    %44 = vector.broadcast %9 : vector<1x128xf32> to vector<8x128xf32>
    %45 = arith.addf %43, %44 : vector<8x128xf32>
    %46 = vector.extract_strided_slice %42 {offsets = [0, 128], sizes = [8, 128], strides = [1, 1]} : vector<8x256xf32> to vector<8x128xf32>
    %47 = vector.broadcast %10 : vector<1x128xf32> to vector<8x128xf32>
    %48 = arith.addf %46, %47 : vector<8x128xf32>
    %49 = vector.shape_cast %40 : vector<8x128xf32> to vector<1x8x2x64xf32>
    %50 = tpu.transpose %49, [0, 2, 1, 3] : vector<1x8x2x64xf32> -> vector<1x2x8x64xf32>
    %51 = vector.shape_cast %50 : vector<1x2x8x64xf32> to vector<2x8x64xf32>
    %52 = vector.shape_cast %45 : vector<8x128xf32> to vector<1x8x2x64xf32>
    %53 = tpu.transpose %52, [0, 2, 1, 3] : vector<1x8x2x64xf32> -> vector<1x2x8x64xf32>
    %54 = vector.shape_cast %53 : vector<1x2x8x64xf32> to vector<2x8x64xf32>
    %55 = vector.shape_cast %48 : vector<8x128xf32> to vector<1x8x2x64xf32>
    %56 = tpu.transpose %55, [0, 2, 1, 3] : vector<1x8x2x64xf32> -> vector<1x2x8x64xf32>
    %57 = vector.shape_cast %56 : vector<1x2x8x64xf32> to vector<2x8x64xf32>
    "tpu.trace_start"() <{level = 10 : i32, message = "bqd,bkd->bqk"}> : () -> ()
    %cst_18 = arith.constant dense<0.000000e+00> : vector<2x8x8xf32>
    %58 = tpu.matmul %51, %54, %cst_18 {dimension_numbers = #tpu.dot_dimension_numbers<[2], [2], [1], [1], [0, 0, 0, 1, 1, 1], [0], [0]>} : vector<2x8x64xf32>, vector<2x8x64xf32>, vector<2x8x8xf32> -> vector<2x8x8xf32>
    "tpu.trace_stop"() : () -> ()
    %59 = vector.shape_cast %58 : vector<2x8x8xf32> to vector<1x2x8x8xf32>
    %60 = tpu.iota {dimensions = array<i32: 0>} : vector<8x8xi32>
    %61 = tpu.iota {dimensions = array<i32: 1>} : vector<8x8xi32>
    %62 = arith.cmpi sgt, %61, %60 : vector<8x8xi32>
    %cst_19 = arith.constant -1.000000e+30 : f32
    %cst_20 = arith.constant 0.000000e+00 : f32
    %63 = vector.broadcast %cst_19 : f32 to vector<8x8xf32>
    %64 = vector.broadcast %cst_20 : f32 to vector<8x8xf32>
    %65 = arith.select %62, %63, %64 : vector<8x8xi1>, vector<8x8xf32>
    %66 = vector.shape_cast %65 : vector<8x8xf32> to vector<1x1x8x8xf32>
    %67 = vector.broadcast %66 : vector<1x1x8x8xf32> to vector<1x2x8x8xf32>
    %68 = arith.addf %59, %67 : vector<1x2x8x8xf32>
    %c0_21 = arith.constant 0 : index
    %c0_22 = arith.constant 0 : index
    %c0_23 = arith.constant 0 : index
    %69 = vector.load %arg1[%c0_21, %c0_22, %c0_23] : memref<1x1x8xf32, #tpu.memory_space<vmem>>, vector<1x1x8xf32>
    %70 = vector.shape_cast %69 : vector<1x1x8xf32> to vector<1x1x1x8xf32>
    %71 = vector.broadcast %70 : vector<1x1x1x8xf32> to vector<1x2x8x8xf32>
    %72 = arith.addf %68, %71 : vector<1x2x8x8xf32>
    %cst_24 = arith.constant dense<0xFF800000> : vector<1x2x8xf32>
    %73 = vector.multi_reduction <maximumf>, %72, %cst_24 [3] : vector<1x2x8x8xf32> to vector<1x2x8xf32>
    %74 = vector.shape_cast %73 : vector<1x2x8xf32> to vector<1x2x8x1xf32>
    %75 = vector.broadcast %74 : vector<1x2x8x1xf32> to vector<1x2x8x8xf32>
    %76 = arith.subf %72, %75 : vector<1x2x8x8xf32>
    %77 = math.exp %76 : vector<1x2x8x8xf32>
    %cst_25 = arith.constant dense<0.000000e+00> : vector<1x2x8xf32>
    %78 = vector.multi_reduction <add>, %77, %cst_25 [3] : vector<1x2x8x8xf32> to vector<1x2x8xf32>
    %79 = vector.shape_cast %78 : vector<1x2x8xf32> to vector<1x2x8x1xf32>
    %80 = vector.shape_cast %77 : vector<1x2x8x8xf32> to vector<2x8x8xf32>
    "tpu.trace_start"() <{level = 10 : i32, message = "bqk,bkd->bqd"}> : () -> ()
    %cst_26 = arith.constant dense<0.000000e+00> : vector<2x8x64xf32>
    %81 = tpu.matmul %80, %57, %cst_26 {dimension_numbers = #tpu.dot_dimension_numbers<[2], [1], [1], [2], [0, 0, 0, 1, 1, 2], [0], [0]>} : vector<2x8x8xf32>, vector<2x8x64xf32>, vector<2x8x64xf32> -> vector<2x8x64xf32>
    "tpu.trace_stop"() : () -> ()
    %82 = vector.shape_cast %79 : vector<1x2x8x1xf32> to vector<2x8x1xf32>
    %83 = tpu.reciprocal %82 {approx = true} : vector<2x8x1xf32> -> vector<2x8x1xf32>
    %84 = vector.broadcast %83 : vector<2x8x1xf32> to vector<2x8x64xf32>
    %85 = arith.mulf %81, %84 : vector<2x8x64xf32>
    %86 = vector.shape_cast %85 : vector<2x8x64xf32> to vector<1x2x8x64xf32>
    %87 = tpu.transpose %86, [0, 2, 1, 3] : vector<1x2x8x64xf32> -> vector<1x8x2x64xf32>
    %88 = vector.shape_cast %87 : vector<1x8x2x64xf32> to vector<8x128xf32>
    %c0_27 = arith.constant 0 : index
    %c0_28 = arith.constant 0 : index
    %89 = vector.load %arg6[%c0_27, %c0_28] : memref<128x128xf32, #tpu.memory_space<vmem>>, vector<128x128xf32>
    %cst_29 = arith.constant dense<0.000000e+00> : vector<8x128xf32>
    %90 = tpu.matmul %88, %89, %cst_29 {dimension_numbers = #tpu.dot_dimension_numbers<[1], [0], [0], [1], [0, 0, 1, 1], [], []>} : vector<8x128xf32>, vector<128x128xf32>, vector<8x128xf32> -> vector<8x128xf32>
    %91 = vector.broadcast %12 : vector<1x128xf32> to vector<8x128xf32>
    %92 = arith.addf %90, %91 : vector<8x128xf32>
    %93 = arith.addf %36, %92 : vector<8x128xf32>
    %cst_30 = arith.constant dense<0.000000e+00> : vector<8xf32>
    %94 = vector.multi_reduction <add>, %93, %cst_30 [1] : vector<8x128xf32> to vector<8xf32>
    %95 = vector.shape_cast %94 : vector<8xf32> to vector<8x1xf32>
    %cst_31 = arith.constant 3.125000e-02 : f32
    %96 = vector.broadcast %cst_31 : f32 to vector<8x1xf32>
    %97 = arith.mulf %95, %96 : vector<8x1xf32>
    %98 = arith.mulf %93, %93 : vector<8x128xf32>
    %cst_32 = arith.constant dense<0.000000e+00> : vector<8xf32>
    %99 = vector.multi_reduction <add>, %98, %cst_32 [1] : vector<8x128xf32> to vector<8xf32>
    %100 = vector.shape_cast %99 : vector<8xf32> to vector<8x1xf32>
    %cst_33 = arith.constant 3.125000e-02 : f32
    %101 = vector.broadcast %cst_33 : f32 to vector<8x1xf32>
    %102 = arith.mulf %100, %101 : vector<8x1xf32>
    %103 = arith.mulf %97, %97 : vector<8x1xf32>
    %104 = arith.subf %102, %103 : vector<8x1xf32>
    %105 = vector.broadcast %97 : vector<8x1xf32> to vector<8x128xf32>
    %106 = arith.subf %93, %105 : vector<8x128xf32>
    %cst_34 = arith.constant 9.99999974E-6 : f32
    %107 = vector.broadcast %cst_34 : f32 to vector<8x1xf32>
    %108 = arith.addf %104, %107 : vector<8x1xf32>
    %109 = math.rsqrt %108 : vector<8x1xf32>
    %110 = vector.broadcast %109 : vector<8x1xf32> to vector<8x128xf32>
    %111 = arith.mulf %106, %110 : vector<8x128xf32>
    %112 = vector.broadcast %5 : vector<1x128xf32> to vector<8x128xf32>
    %113 = arith.mulf %111, %112 : vector<8x128xf32>
    %114 = vector.broadcast %6 : vector<1x128xf32> to vector<8x128xf32>
    %115 = arith.addf %113, %114 : vector<8x128xf32>
    %c0_35 = arith.constant 0 : index
    %c0_36 = arith.constant 0 : index
    %c0_37 = arith.constant 0 : index
    %116 = vector.load %arg7[%c0_35, %c0_36, %c0_37] : memref<2x128x128xf32, #tpu.memory_space<vmem>>, vector<1x128x128xf32>
    %117 = vector.shape_cast %116 : vector<1x128x128xf32> to vector<128x128xf32>
    %cst_38 = arith.constant dense<0.000000e+00> : vector<8x128xf32>
    %118 = tpu.matmul %115, %117, %cst_38 {dimension_numbers = #tpu.dot_dimension_numbers<[1], [0], [0], [1], [0, 0, 1, 1], [], []>} : vector<8x128xf32>, vector<128x128xf32>, vector<8x128xf32> -> vector<8x128xf32>
    %119 = vector.broadcast %13 : vector<1x128xf32> to vector<8x128xf32>
    %120 = arith.addf %118, %119 : vector<8x128xf32>
    %cst_39 = arith.constant 0.000000e+00 : f32
    %121 = vector.broadcast %cst_39 : f32 to vector<8x128xf32>
    %122 = arith.maximumf %120, %121 : vector<8x128xf32>
    %c1 = arith.constant 1 : index
    %c0_40 = arith.constant 0 : index
    %c0_41 = arith.constant 0 : index
    %123 = vector.load %arg7[%c1, %c0_40, %c0_41] : memref<2x128x128xf32, #tpu.memory_space<vmem>>, vector<1x128x128xf32>
    %124 = vector.shape_cast %123 : vector<1x128x128xf32> to vector<128x128xf32>
    %cst_42 = arith.constant dense<0.000000e+00> : vector<8x128xf32>
    %125 = tpu.matmul %122, %124, %cst_42 {dimension_numbers = #tpu.dot_dimension_numbers<[1], [0], [0], [1], [0, 0, 1, 1], [], []>} : vector<8x128xf32>, vector<128x128xf32>, vector<8x128xf32> -> vector<8x128xf32>
    %126 = vector.broadcast %14 : vector<1x128xf32> to vector<8x128xf32>
    %127 = arith.addf %125, %126 : vector<8x128xf32>
    %128 = arith.addf %127, %115 : vector<8x128xf32>
    %129 = vector.shape_cast %128 : vector<8x128xf32> to vector<1x8x128xf32>
    %c0_43 = arith.constant 0 : index
    %c0_44 = arith.constant 0 : index
    %c0_45 = arith.constant 0 : index
    %130 = vector.load %arg10[%c0_43, %c0_44, %c0_45] : memref<1x8x128xf32, #tpu.memory_space<vmem>>, vector<1x8x128xf32>
    tpu.vector_store %arg10[%c0_43, %c0_44, %c0_45], %129 {strides = array<i32>} : memref<1x8x128xf32, #tpu.memory_space<vmem>>, vector<1x8x128xf32>,
    return
  }
  func.func @transform_0(%arg0: i32) -> (i32, i32, i32) {
    %c0_i32 = arith.constant 0 : i32
    %c0_i32_0 = arith.constant 0 : i32
    %c0_i32_1 = arith.constant 0 : i32
    return %arg0, %c0_i32, %c0_i32_0 : i32, i32, i32
  }
  func.func @transform_1(%arg0: i32) -> (i32, i32, i32) {
    %c0_i32 = arith.constant 0 : i32
    %c0_i32_0 = arith.constant 0 : i32
    %c0_i32_1 = arith.constant 0 : i32
    return %arg0, %c0_i32, %c0_i32_0 : i32, i32, i32
  }
  func.func @transform_2(%arg0: i32) -> (i32, i32) {
    %c0_i32 = arith.constant 0 : i32
    %c0_i32_0 = arith.constant 0 : i32
    %c0_i32_1 = arith.constant 0 : i32
    return %c0_i32, %c0_i32_0 : i32, i32
  }
  func.func @transform_3(%arg0: i32) -> (i32, i32) {
    %c0_i32 = arith.constant 0 : i32
    %c0_i32_0 = arith.constant 0 : i32
    %c0_i32_1 = arith.constant 0 : i32
    return %c0_i32, %c0_i32_0 : i32, i32
  }
  func.func @transform_4(%arg0: i32) -> (i32, i32) {
    %c0_i32 = arith.constant 0 : i32
    %c0_i32_0 = arith.constant 0 : i32
    %c0_i32_1 = arith.constant 0 : i32
    return %c0_i32, %c0_i32_0 : i32, i32
  }
  func.func @transform_5(%arg0: i32) -> (i32, i32) {
    %c0_i32 = arith.constant 0 : i32
    %c0_i32_0 = arith.constant 0 : i32
    %c0_i32_1 = arith.constant 0 : i32
    return %c0_i32, %c0_i32_0 : i32, i32
  }
  func.func @transform_6(%arg0: i32) -> (i32, i32, i32) {
    %c0_i32 = arith.constant 0 : i32
    %c0_i32_0 = arith.constant 0 : i32
    %c0_i32_1 = arith.constant 0 : i32
    %c0_i32_2 = arith.constant 0 : i32
    return %c0_i32, %c0_i32_0, %c0_i32_1 : i32, i32, i32
  }
  func.func @transform_7(%arg0: i32) -> (i32, i32) {
    %c0_i32 = arith.constant 0 : i32
    %c0_i32_0 = arith.constant 0 : i32
    %c0_i32_1 = arith.constant 0 : i32
    return %c0_i32, %c0_i32_0 : i32, i32
  }
  func.func @transform_8(%arg0: i32) -> (i32, i32) {
    %c0_i32 = arith.constant 0 : i32
    %c0_i32_0 = arith.constant 0 : i32
    %c0_i32_1 = arith.constant 0 : i32
    return %c0_i32, %c0_i32_0 : i32, i32
  }
  func.func @transform_9(%arg0: i32) -> (i32, i32, i32) {
    %c0_i32 = arith.constant 0 : i32
    %c0_i32_0 = arith.constant 0 : i32
    %c0_i32_1 = arith.constant 0 : i32
    return %arg0, %c0_i32, %c0_i32_0 : i32, i32, i32
  }
}

</mosaic_0001>

<llo_original>
// kernel: tpu_custom_call.1
$region0: #{tpu_custom_call.1}
  #allocation0 [shape = 'u32[]', space=smem, size = 0x4, offset = 0x4, fixed_abs, tag = 'smem constant byte address 0x4 - core index']
  #allocation1 [shape = 'u32[144,128]{1,0:T(1,128)}', space=vmem, size = 0x12000, scoped, tag = 'internal scratch']
  %s0 = inlined_call_operand.hbm [shape: f32[2,1,8], index: 0, kind: input, shape index: {}]
  %s1 = inlined_call_operand.hbm [shape: f32[2,8,128], index: 1, kind: input, shape index: {}]
  %s2 = inlined_call_operand.hbm [shape: f32[4,128], index: 2, kind: input, shape index: {}]
  %s3 = inlined_call_operand.hbm [shape: f32[128,128], index: 3, kind: input, shape index: {}]
  %s4 = inlined_call_operand.hbm [shape: f32[128,256], index: 4, kind: input, shape index: {}]
  %s5 = inlined_call_operand.hbm [shape: f32[128,128], index: 5, kind: input, shape index: {}]
  %s6 = inlined_call_operand.hbm [shape: f32[2,128,128], index: 6, kind: input, shape index: {}]
  %s7 = inlined_call_operand.vmem [shape: f32[3,128], index: 7, kind: input, shape index: {}]
  %s8 = inlined_call_operand.vmem [shape: f32[3,128], index: 8, kind: input, shape index: {}]
  %s9 = inlined_call_operand.hbm [shape: f32[2,8,128], index: 9, kind: output, shape index: {}]
  %s10 = sld [smem:[#allocation0]]
  $region97: #{tpu_custom_call.1} parent=0
    _
  %s12 = ssub.s32 1, %s10
  %s13 = scalar_select 0, %s12, %s10
  $region1: #{tpu_custom_call.1} parent=0
    #allocation2 [shape = 'u8[1024]{0}', space=vmem, size = 0x400, scoped, tag = 'input window, operand 0']
    #allocation3 [shape = 's32[2]{0}', space=sflag, size = 0x8, scoped, tag = 'scoped memory for tpu_custom_call.1']
    #allocation4 [shape = 's32[2]{0}', space=sflag, size = 0x8, scoped, tag = 'scoped memory for tpu_custom_call.1']
    #allocation5 [shape = 'u8[8192]{0}', space=vmem, size = 0x2000, scoped, tag = 'input window, operand 1']
    #allocation6 [shape = 's32[2]{0}', space=sflag, size = 0x8, scoped, tag = 'scoped memory for tpu_custom_call.1']
    #allocation7 [shape = 'u8[2048]{0}', space=vmem, size = 0x800, scoped, tag = 'input window, operand 2, single buffered']
    #allocation8 [shape = 'u8[65536]{0}', space=vmem, size = 0x10000, scoped, tag = 'input window, operand 3, single buffered']
    #allocation9 [shape = 's32[1]{0}', space=sflag, size = 0x4, scoped, tag = 'scoped memory for tpu_custom_call.1']
    #allocation10 [shape = 'u8[131072]{0}', space=vmem, size = 0x20000, scoped, tag = 'input window, operand 4, single buffered']
    #allocation11 [shape = 'u8[65536]{0}', space=vmem, size = 0x10000, scoped, tag = 'input window, operand 5, single buffered']
    #allocation12 [shape = 's32[1]{0}', space=sflag, size = 0x4, scoped, tag = 'scoped memory for tpu_custom_call.1']
    #allocation13 [shape = 'u8[131072]{0}', space=vmem, size = 0x20000, scoped, tag = 'input window, operand 6, single buffered']
    #allocation14 [shape = 'u8[8192]{0}', space=vmem, size = 0x2000, scoped, tag = 'output window, operand 0']
    %14 = vsyncpa [#allocation3], 0
    %s15 = scalar_lea.sflag [#allocation3], 1
    %16 = vsyncpa %s15, 0
    %17 = vsyncpa [#allocation6], 0
    %s18 = scalar_lea.sflag [#allocation6], 1
    %19 = vsyncpa %s18, 0
    %20 = vsyncpa [#allocation9], 0
    %21 = vsyncpa [#allocation12], 0
    %22 = vsyncpa [#allocation4], 0
    %s23 = scalar_lea.sflag [#allocation4], 1
    %24 = vsyncpa %s23, 0
    loop: start=0, step=1, limit=4
    $region2: #{tpu_custom_call.1} parent=1 // loop_pre_header
      _
    $region3: #{tpu_custom_call.1} parent=1 // loop_header
      %s26 = sphi 0, %s30
      %p27 = scmp.ge.s32.totalorder %s26, 4
      %s36 = sphi 0, %s38
      %s39 = sphi 0, %s36
      %s40 = sphi 0, %s39
      %s56 = sphi 0, %s40
      %s62 = sphi 0, %s64
      %s65 = sphi 0, %s62
      %s66 = sphi 0, %s65
      %s82 = sphi 0, %s66
      %s86 = sphi 0, %s86
      %s88 = sphi 0, %s86
      %s89 = sphi 0, %s88
      %s103 = sphi 0, %s89
      %s107 = sphi 0, %s107
      %s109 = sphi 0, %s107
      %s110 = sphi 0, %s109
      %s124 = sphi 0, %s110
      %s128 = sphi 0, %s128
      %s130 = sphi 0, %s128
      %s131 = sphi 0, %s130
      %s145 = sphi 0, %s131
      %s149 = sphi 0, %s149
      %s151 = sphi 0, %s149
      %s152 = sphi 0, %s151
      %s166 = sphi 0, %s152
      %s170 = sphi 0, %s170
      %s172 = sphi 0, %s170
      %s173 = sphi 0, %s172
      %s187 = sphi 0, %s173
      %s191 = sphi 0, %s191
      %s193 = sphi 0, %s191
      %s194 = sphi 0, %s193
      %s208 = sphi 0, %s194
      %s212 = sphi 0, %s212
      %s214 = sphi 0, %s212
      %s215 = sphi 0, %s214
      %s229 = sphi 0, %s215
      %s235 = sphi 0, %s237
      %s238 = sphi 0, %s235
      %s239 = sphi 0, %s238
      %s255 = sphi 0, %s239
    $region4: #{tpu_custom_call.1} parent=1 // loop_header_branch
      %29 = sbr.rel (%p27) target = $region8
    $region5: #{tpu_custom_call.1} parent=1 // loop_body
      %s31 = ssub.s32 %s26, 1
      %s32 = ssub.s32 %s26, 2
      %s33 = sadd.s32 %s26, 1
      %s34 = ssub.s32 %s26, %s33
      %p35 = scmp.eq.s32.totalorder %s34, 0
      %s37 = sadd.s32 %s36, 1
      %s38 = scalar_select %p35, %s36, %s37
      %p41 = pneg %p35
      %p42 = scmp.eq.s32.totalorder %s26, 1
      %p43 = por %p41, %p42
      %p44 = scmp.ne.s32.totalorder %s36, %s39
      %p45 = scmp.eq.s32.totalorder %s26, 0
      %p46 = por %p44, %p45
      %p47 = scmp.ne.s32.totalorder %s36, %s39
      %p48 = scmp.eq.s32.totalorder %s31, 1
      %p49 = por %p47, %p48
      %p50 = scmp.ne.s32.totalorder %s39, %s40
      %p51 = scmp.eq.s32.totalorder %s31, 0
      %p52 = por %p50, %p51
      %p53 = scmp.ne.s32.totalorder %s39, %s40
      %p54 = scmp.eq.s32.totalorder %s32, 1
      %p55 = por %p53, %p54
      %p57 = scmp.ne.s32.totalorder %s40, %s56
      %p58 = scmp.eq.s32.totalorder %s32, 0
      %p59 = por %p57, %p58
      %s60 = ssub.s32 %s26, %s33
      %p61 = scmp.eq.s32.totalorder %s60, 0
      %s63 = sadd.s32 %s62, 1
      %s64 = scalar_select %p61, %s62, %s63
      %p67 = pneg %p61
      %p68 = scmp.eq.s32.totalorder %s26, 1
      %p69 = por %p67, %p68
      %p70 = scmp.ne.s32.totalorder %s62, %s65
      %p71 = scmp.eq.s32.totalorder %s26, 0
      %p72 = por %p70, %p71
      %p73 = scmp.ne.s32.totalorder %s62, %s65
      %p74 = scmp.eq.s32.totalorder %s31, 1
      %p75 = por %p73, %p74
      %p76 = scmp.ne.s32.totalorder %s65, %s66
      %p77 = scmp.eq.s32.totalorder %s31, 0
      %p78 = por %p76, %p77
      %p79 = scmp.ne.s32.totalorder %s65, %s66
      %p80 = scmp.eq.s32.totalorder %s32, 1
      %p81 = por %p79, %p80
      %p83 = scmp.ne.s32.totalorder %s66, %s82
      %p84 = scmp.eq.s32.totalorder %s32, 0
      %p85 = por %p83, %p84
      %s87 = sadd.s32 %s86, 1
      %p90 = scmp.eq.s32.totalorder %s26, 1
      %p91 = scmp.ne.s32.totalorder %s86, %s88
      %p92 = scmp.eq.s32.totalorder %s26, 0
      %p93 = por %p91, %p92
      %p94 = scmp.ne.s32.totalorder %s86, %s88
      %p95 = scmp.eq.s32.totalorder %s31, 1
      %p96 = por %p94, %p95
      %p97 = scmp.ne.s32.totalorder %s88, %s89
      %p98 = scmp.eq.s32.totalorder %s31, 0
      %p99 = por %p97, %p98
      %p100 = scmp.ne.s32.totalorder %s88, %s89
      %p101 = scmp.eq.s32.totalorder %s32, 1
      %p102 = por %p100, %p101
      %p104 = scmp.ne.s32.totalorder %s89, %s103
      %p105 = scmp.eq.s32.totalorder %s32, 0
      %p106 = por %p104, %p105
      %s108 = sadd.s32 %s107, 1
      %p111 = scmp.eq.s32.totalorder %s26, 1
      %p112 = scmp.ne.s32.totalorder %s107, %s109
      %p113 = scmp.eq.s32.totalorder %s26, 0
      %p114 = por %p112, %p113
      %p115 = scmp.ne.s32.totalorder %s107, %s109
      %p116 = scmp.eq.s32.totalorder %s31, 1
      %p117 = por %p115, %p116
      %p118 = scmp.ne.s32.totalorder %s109, %s110
      %p119 = scmp.eq.s32.totalorder %s31, 0
      %p120 = por %p118, %p119
      %p121 = scmp.ne.s32.totalorder %s109, %s110
      %p122 = scmp.eq.s32.totalorder %s32, 1
      %p123 = por %p121, %p122
      %p125 = scmp.ne.s32.totalorder %s110, %s124
      %p126 = scmp.eq.s32.totalorder %s32, 0
      %p127 = por %p125, %p126
      %s129 = sadd.s32 %s128, 1
      %p132 = scmp.eq.s32.totalorder %s26, 1
      %p133 = scmp.ne.s32.totalorder %s128, %s130
      %p134 = scmp.eq.s32.totalorder %s26, 0
      %p135 = por %p133, %p134
      %p136 = scmp.ne.s32.totalorder %s128, %s130
      %p137 = scmp.eq.s32.totalorder %s31, 1
      %p138 = por %p136, %p137
      %p139 = scmp.ne.s32.totalorder %s130, %s131
      %p140 = scmp.eq.s32.totalorder %s31, 0
      %p141 = por %p139, %p140
      %p142 = scmp.ne.s32.totalorder %s130, %s131
      %p143 = scmp.eq.s32.totalorder %s32, 1
      %p144 = por %p142, %p143
      %p146 = scmp.ne.s32.totalorder %s131, %s145
      %p147 = scmp.eq.s32.totalorder %s32, 0
      %p148 = por %p146, %p147
      %s150 = sadd.s32 %s149, 1
      %p153 = scmp.eq.s32.totalorder %s26, 1
      %p154 = scmp.ne.s32.totalorder %s149, %s151
      %p155 = scmp.eq.s32.totalorder %s26, 0
      %p156 = por %p154, %p155
      %p157 = scmp.ne.s32.totalorder %s149, %s151
      %p158 = scmp.eq.s32.totalorder %s31, 1
      %p159 = por %p157, %p158
      %p160 = scmp.ne.s32.totalorder %s151, %s152
      %p161 = scmp.eq.s32.totalorder %s31, 0
      %p162 = por %p160, %p161
      %p163 = scmp.ne.s32.totalorder %s151, %s152
      %p164 = scmp.eq.s32.totalorder %s32, 1
      %p165 = por %p163, %p164
      %p167 = scmp.ne.s32.totalorder %s152, %s166
      %p168 = scmp.eq.s32.totalorder %s32, 0
      %p169 = por %p167, %p168
      %s171 = sadd.s32 %s170, 1
      %p174 = scmp.eq.s32.totalorder %s26, 1
      %p175 = scmp.ne.s32.totalorder %s170, %s172
      %p176 = scmp.eq.s32.totalorder %s26, 0
      %p177 = por %p175, %p176
      %p178 = scmp.ne.s32.totalorder %s170, %s172
      %p179 = scmp.eq.s32.totalorder %s31, 1
      %p180 = por %p178, %p179
      %p181 = scmp.ne.s32.totalorder %s172, %s173
      %p182 = scmp.eq.s32.totalorder %s31, 0
      %p183 = por %p181, %p182
      %p184 = scmp.ne.s32.totalorder %s172, %s173
      %p185 = scmp.eq.s32.totalorder %s32, 1
      %p186 = por %p184, %p185
      %p188 = scmp.ne.s32.totalorder %s173, %s187
      %p189 = scmp.eq.s32.totalorder %s32, 0
      %p190 = por %p188, %p189
      %s192 = sadd.s32 %s191, 1
      %p195 = scmp.eq.s32.totalorder %s26, 1
      %p196 = scmp.ne.s32.totalorder %s191, %s193
      %p197 = scmp.eq.s32.totalorder %s26, 0
      %p198 = por %p196, %p197
      %p199 = scmp.ne.s32.totalorder %s191, %s193
      %p200 = scmp.eq.s32.totalorder %s31, 1
      %p201 = por %p199, %p200
      %p202 = scmp.ne.s32.totalorder %s193, %s194
      %p203 = scmp.eq.s32.totalorder %s31, 0
      %p204 = por %p202, %p203
      %p205 = scmp.ne.s32.totalorder %s193, %s194
      %p206 = scmp.eq.s32.totalorder %s32, 1
      %p207 = por %p205, %p206
      %p209 = scmp.ne.s32.totalorder %s194, %s208
      %p210 = scmp.eq.s32.totalorder %s32, 0
      %p211 = por %p209, %p210
      %s213 = sadd.s32 %s212, 1
      %p216 = scmp.eq.s32.totalorder %s26, 1
      %p217 = scmp.ne.s32.totalorder %s212, %s214
      %p218 = scmp.eq.s32.totalorder %s26, 0
      %p219 = por %p217, %p218
      %p220 = scmp.ne.s32.totalorder %s212, %s214
      %p221 = scmp.eq.s32.totalorder %s31, 1
      %p222 = por %p220, %p221
      %p223 = scmp.ne.s32.totalorder %s214, %s215
      %p224 = scmp.eq.s32.totalorder %s31, 0
      %p225 = por %p223, %p224
      %p226 = scmp.ne.s32.totalorder %s214, %s215
      %p227 = scmp.eq.s32.totalorder %s32, 1
      %p228 = por %p226, %p227
      %p230 = scmp.ne.s32.totalorder %s215, %s229
      %p231 = scmp.eq.s32.totalorder %s32, 0
      %p232 = por %p230, %p231
      %s233 = ssub.s32 %s26, %s33
      %p234 = scmp.eq.s32.totalorder %s233, 0
      %s236 = sadd.s32 %s235, 1
      %s237 = scalar_select %p234, %s235, %s236
      %p240 = pneg %p234
      %p241 = scmp.eq.s32.totalorder %s26, 1
      %p242 = por %p240, %p241
      %p243 = scmp.ne.s32.totalorder %s235, %s238
      %p244 = scmp.eq.s32.totalorder %s26, 0
      %p245 = por %p243, %p244
      %p246 = scmp.ne.s32.totalorder %s235, %s238
      %p247 = scmp.eq.s32.totalorder %s31, 1
      %p248 = por %p246, %p247
      %p249 = scmp.ne.s32.totalorder %s238, %s239
      %p250 = scmp.eq.s32.totalorder %s31, 0
      %p251 = por %p249, %p250
      %p252 = scmp.ne.s32.totalorder %s238, %s239
      %p253 = scmp.eq.s32.totalorder %s32, 1
      %p254 = por %p252, %p253
      %p256 = scmp.ne.s32.totalorder %s239, %s255
      %p257 = scmp.eq.s32.totalorder %s32, 0
      %p258 = por %p256, %p257
      %p259 = scmp.le.s32.totalorder 1, %s26
      %p260 = scmp.lt.s32.totalorder %s26, 3
      %p261 = pnand %p259, %p260
      %p262 = pneg %p261
      // Predicated region
      $region9: #{tpu_custom_call.1} parent=5 // pred_check
        _
      $region10: #{tpu_custom_call.1} parent=5 // pred_check_branch
        %264 = sbr.rel (%p261) target = $region12
      $region11: #{tpu_custom_call.1} parent=5 // pred_region
        %s265 = ssub.s32 %s26, 1
        // Predicated region
        $region13: #{tpu_custom_call.1} parent=11 // pred_check
          %p266 = pneg %p99
        $region14: #{tpu_custom_call.1} parent=11 // pred_check_branch
          %268 = sbr.rel (%p266) target = $region16
        $region15: #{tpu_custom_call.1} parent=11 // pred_region
          %s270 = ssub.s32 64, 64
          %271 = vsyncadd [#allocation6], %s270
          %s273 = sshll.u32 [#allocation7], 4
          %s274 = int_to_ptr.vmem [resolvable:$true] %s273
          %276 = dma.hbm_to_vmem [thread:$0]  %s2, 64, %s274, [#allocation6]
        $region16: #{tpu_custom_call.1} parent=11 // pred_fallthru
          _
        // Predicated region
        $region17: #{tpu_custom_call.1} parent=11 // pred_check
          %p277 = pneg %p120
        $region18: #{tpu_custom_call.1} parent=11 // pred_check_branch
          %279 = sbr.rel (%p277) target = $region20
        $region19: #{tpu_custom_call.1} parent=11 // pred_region
          %s281 = ssub.s32 2048, 2048
          %282 = vsyncadd [#allocation9], %s281
          %s283 = sshll.u32 [#allocation8], 4
          %s284 = int_to_ptr.vmem [resolvable:$true] %s283
          %289 = dma.hbm_to_vmem [thread:$0]  %s3, 2048, %s284, [#allocation9], 128, 128, 8
        $region20: #{tpu_custom_call.1} parent=11 // pred_fallthru
          _
        // Predicated region
        $region21: #{tpu_custom_call.1} parent=11 // pred_check
          %p290 = pneg %p141
        $region22: #{tpu_custom_call.1} parent=11 // pred_check_branch
          %292 = sbr.rel (%p290) target = $region24
        $region23: #{tpu_custom_call.1} parent=11 // pred_region
          %s294 = ssub.s32 4096, 4096
          %295 = vsyncadd [#allocation9], %s294
          %s296 = sshll.u32 [#allocation10], 4
          %s297 = int_to_ptr.vmem [resolvable:$true] %s296
          %302 = dma.hbm_to_vmem [thread:$0]  %s4, 4096, %s297, [#allocation9], 256, 256, 16
        $region24: #{tpu_custom_call.1} parent=11 // pred_fallthru
          _
        // Predicated region
        $region25: #{tpu_custom_call.1} parent=11 // pred_check
          %p303 = pneg %p162
        $region26: #{tpu_custom_call.1} parent=11 // pred_check_branch
          %305 = sbr.rel (%p303) target = $region28
        $region27: #{tpu_custom_call.1} parent=11 // pred_region
          %s307 = ssub.s32 2048, 2048
          %308 = vsyncadd [#allocation12], %s307
          %s309 = sshll.u32 [#allocation11], 4
          %s310 = int_to_ptr.vmem [resolvable:$true] %s309
          %315 = dma.hbm_to_vmem [thread:$0]  %s5, 2048, %s310, [#allocation12], 128, 128, 8
        $region28: #{tpu_custom_call.1} parent=11 // pred_fallthru
          _
        // Predicated region
        $region29: #{tpu_custom_call.1} parent=11 // pred_check
          %p316 = pneg %p183
        $region30: #{tpu_custom_call.1} parent=11 // pred_check_branch
          %318 = sbr.rel (%p316) target = $region32
        $region31: #{tpu_custom_call.1} parent=11 // pred_region
          %s320 = ssub.s32 4096, 4096
          %321 = vsyncadd [#allocation12], %s320
          %s322 = sshll.u32 [#allocation13], 4
          %s323 = int_to_ptr.vmem [resolvable:$true] %s322
          %328 = dma.hbm_to_vmem [thread:$0]  %s6, 4096, %s323, [#allocation12], 128, 128, 8
        $region32: #{tpu_custom_call.1} parent=11 // pred_fallthru
          _
        // Predicated region
        $region33: #{tpu_custom_call.1} parent=11 // pred_check
          %p329 = pneg %p204
        $region34: #{tpu_custom_call.1} parent=11 // pred_check_branch
          %331 = sbr.rel (%p329) target = $region36
        $region35: #{tpu_custom_call.1} parent=11 // pred_region
          _
        $region36: #{tpu_custom_call.1} parent=11 // pred_fallthru
          _
        // Predicated region
        $region37: #{tpu_custom_call.1} parent=11 // pred_check
          %p332 = pneg %p225
        $region38: #{tpu_custom_call.1} parent=11 // pred_check_branch
          %334 = sbr.rel (%p332) target = $region40
        $region39: #{tpu_custom_call.1} parent=11 // pred_region
          _
        $region40: #{tpu_custom_call.1} parent=11 // pred_fallthru
          _
      $region12: #{tpu_custom_call.1} parent=5 // pred_fallthru
        _
      %p335 = scmp.lt.s32.totalorder %s26, 2
      // Predicated region
      $region41: #{tpu_custom_call.1} parent=5 // pred_check
        %p336 = pneg %p335
      $region42: #{tpu_custom_call.1} parent=5 // pred_check_branch
        %338 = sbr.rel (%p336) target = $region44
      $region43: #{tpu_custom_call.1} parent=5 // pred_region
        // Predicated region
        $region45: #{tpu_custom_call.1} parent=43 // pred_check
          %p339 = pneg %p46
        $region46: #{tpu_custom_call.1} parent=43 // pred_check_branch
          %341 = sbr.rel (%p339) target = $region48
        $region47: #{tpu_custom_call.1} parent=43 // pred_region
          %s342 = sand.u32 %s36, 1
          %s343 = scalar_lea.sflag [#allocation3], %s342
          %s344 = sand.u32 %s36, 1
          %s345 = scalar_lea.vmem [#allocation2], %s344
          %s347 = ssub.s32 16, 16
          %348 = vsyncadd %s343, %s347
          %s349 = smul.addr %s26, 16
          %s350 = scalar_lea.hbm %s0, %s349
          %s352 = sshll.u32 %s345, 4
          %s353 = int_to_ptr.vmem [resolvable:$true] %s352
          %355 = dma.hbm_to_vmem [thread:$0]  %s350, 16, %s353, %s343
        $region48: #{tpu_custom_call.1} parent=43 // pred_fallthru
          _
        // Predicated region
        $region49: #{tpu_custom_call.1} parent=43 // pred_check
          %p356 = pneg %p72
        $region50: #{tpu_custom_call.1} parent=43 // pred_check_branch
          %358 = sbr.rel (%p356) target = $region52
        $region51: #{tpu_custom_call.1} parent=43 // pred_region
          %s359 = sand.u32 %s26, 1
          %s360 = scalar_lea.sflag [#allocation6], %s359
          %s361 = sand.u32 %s62, 1
          %s362 = smul.addr %s361, 8
          %s363 = scalar_lea.vmem [#allocation5], %s362
          %s365 = ssub.s32 128, 128
          %366 = vsyncadd %s360, %s365
          %s367 = smul.addr %s26, 128
          %s368 = scalar_lea.hbm %s1, %s367
          %s370 = sshll.u32 %s363, 4
          %s371 = int_to_ptr.vmem [resolvable:$true] %s370
          %373 = dma.hbm_to_vmem [thread:$0]  %s368, 128, %s371, %s360
        $region52: #{tpu_custom_call.1} parent=43 // pred_fallthru
          _
      $region44: #{tpu_custom_call.1} parent=5 // pred_fallthru
        _
      %p374 = scmp.le.s32.totalorder 1, %s26
      %p375 = scmp.lt.s32.totalorder %s26, 3
      %p376 = pnand %p374, %p375
      %p377 = pneg %p376
      // Predicated region
      $region53: #{tpu_custom_call.1} parent=5 // pred_check
        _
      $region54: #{tpu_custom_call.1} parent=5 // pred_check_branch
        %379 = sbr.rel (%p376) target = $region56
      $region55: #{tpu_custom_call.1} parent=5 // pred_region
        %s380 = ssub.s32 %s26, 1
        %s381 = sand.u32 %s39, 1
        %s382 = scalar_lea.sflag [#allocation3], %s381
        %s383 = sand.u32 %s39, 1
        %s384 = scalar_lea.vmem [#allocation2], %s383
        // Predicated region
        $region57: #{tpu_custom_call.1} parent=55 // pred_check
          %p385 = pneg %p52
        $region58: #{tpu_custom_call.1} parent=55 // pred_check_branch
          %387 = sbr.rel (%p385) target = $region60
        $region59: #{tpu_custom_call.1} parent=55 // pred_region
          %388 = dma.done %s382, 16
        $region60: #{tpu_custom_call.1} parent=55 // pred_fallthru
          _
        %s389 = sand.u32 %s31, 1
        %s390 = scalar_lea.sflag [#allocation6], %s389
        %s391 = sand.u32 %s65, 1
        %s392 = smul.addr %s391, 8
        %s393 = scalar_lea.vmem [#allocation5], %s392
        // Predicated region
        $region61: #{tpu_custom_call.1} parent=55 // pred_check
          %p394 = pneg %p78
        $region62: #{tpu_custom_call.1} parent=55 // pred_check_branch
          %396 = sbr.rel (%p394) target = $region64
        $region63: #{tpu_custom_call.1} parent=55 // pred_region
          %397 = dma.done %s390, 128
        $region64: #{tpu_custom_call.1} parent=55 // pred_fallthru
          _
        // Predicated region
        $region65: #{tpu_custom_call.1} parent=55 // pred_check
          %p398 = pneg %p99
        $region66: #{tpu_custom_call.1} parent=55 // pred_check_branch
          %400 = sbr.rel (%p398) target = $region68
        $region67: #{tpu_custom_call.1} parent=55 // pred_region
          %401 = dma.done [#allocation6], 64
        $region68: #{tpu_custom_call.1} parent=55 // pred_fallthru
          _
        // Predicated region
        $region69: #{tpu_custom_call.1} parent=55 // pred_check
          %p402 = pneg %p120
        $region70: #{tpu_custom_call.1} parent=55 // pred_check_branch
          %404 = sbr.rel (%p402) target = $region72
        $region71: #{tpu_custom_call.1} parent=55 // pred_region
          %405 = dma.done [#allocation9], 2048
        $region72: #{tpu_custom_call.1} parent=55 // pred_fallthru
          _
        // Predicated region
        $region73: #{tpu_custom_call.1} parent=55 // pred_check
          %p406 = pneg %p141
        $region74: #{tpu_custom_call.1} parent=55 // pred_check_branch
          %408 = sbr.rel (%p406) target = $region76
        $region75: #{tpu_custom_call.1} parent=55 // pred_region
          %409 = dma.done [#allocation9], 4096
        $region76: #{tpu_custom_call.1} parent=55 // pred_fallthru
          _
        // Predicated region
        $region77: #{tpu_custom_call.1} parent=55 // pred_check
          %p410 = pneg %p162
        $region78: #{tpu_custom_call.1} parent=55 // pred_check_branch
          %412 = sbr.rel (%p410) target = $region80
        $region79: #{tpu_custom_call.1} parent=55 // pred_region
          %413 = dma.done [#allocation12], 2048
        $region80: #{tpu_custom_call.1} parent=55 // pred_fallthru
          _
        // Predicated region
        $region81: #{tpu_custom_call.1} parent=55 // pred_check
          %p414 = pneg %p183
        $region82: #{tpu_custom_call.1} parent=55 // pred_check_branch
          %416 = sbr.rel (%p414) target = $region84
        $region83: #{tpu_custom_call.1} parent=55 // pred_region
          %417 = dma.done [#allocation12], 4096
        $region84: #{tpu_custom_call.1} parent=55 // pred_fallthru
          _
        %s418 = sand.u32 %s39, 1
        %s419 = scalar_lea.sflag [#allocation3], %s418
        %s420 = sand.u32 %s39, 1
        %s421 = scalar_lea.vmem [#allocation2], %s420
        %p422 = pneg %p52
        %p423 = pneg %p49
        %s424 = sand.u32 %s31, 1
        %s425 = scalar_lea.sflag [#allocation6], %s424
        %s426 = sand.u32 %s65, 1
        %s427 = smul.addr %s426, 8
        %s428 = scalar_lea.vmem [#allocation5], %s427
        %p429 = pneg %p78
        %p430 = pneg %p75
        %p431 = pneg %p99
        %p432 = pneg %p96
        %p433 = pneg %p120
        %p434 = pneg %p117
        %p435 = pneg %p141
        %p436 = pneg %p138
        %p437 = pneg %p162
        %p438 = pneg %p159
        %p439 = pneg %p183
        %p440 = pneg %p180
        %p441 = pneg %p204
        %p442 = pneg %p201
        %p443 = pneg %p225
        %p444 = pneg %p222
        %p445 = pneg %p251
        %p446 = pneg %p248
        %s447 = sand.u32 %s238, 1
        %s448 = scalar_lea.sflag [#allocation4], %s447
        %s449 = sand.u32 %s238, 1
        %s450 = smul.addr %s449, 8
        %s451 = scalar_lea.vmem [#allocation14], %s450
        %v452 = vld [vmem:[%s393] sm:$0xff]
        %v453 = vld [vmem:[#allocation7] sm:$0xf]
        %v454 = vld [vmem:[%s7] sm:$0x7]
        %v455 = vld [vmem:[%s8] sm:$0x7]
        %456 = vadd.xlane.f32.xlu0 %v452
        %v457 = vpop.xlane.xlu0 %456
        %v458 = vmul.f32 %v457, 0.03125
        %v459 = vmul.f32 %v452, %v452
        %460 = vadd.xlane.f32.xlu0 %v459
        %v461 = vpop.xlane.xlu0 %460
        %v462 = vmul.f32 %v461, 0.03125
        %v463 = vmul.f32 %v458, %v458
        %v464 = vsub.f32 %v462, %v463
        %v465 = vsub.f32 %v452, %v458
        %v466 = vadd.f32 %v464, 1e-05
        %v467 = vrsqrt.pop %v466
        %v468 = vmul.f32 %v465, %v467
        %v469 = vlaneseq
        %v470 = vshrl.u32 %v469, 7
        %v471 = vsub.s32 0, %v470
        %v472 = vrot.slane %v453, %v471
        %v473 = vmul.f32 %v468, %v472
        %v474 = vlaneseq
        %v475 = vshrl.u32 %v474, 7
        %v476 = vsub.s32 1, %v475
        %v477 = vrot.slane %v453, %v476
        %v478 = vadd.f32 %v473, %v477
        %v479 = vld [vmem:[#allocation8] sm:$0xff]
        %v480 = vld [vmem:[#allocation8 + $0x8] sm:$0xff]
        %v481 = vld [vmem:[#allocation8 + $0x10] sm:$0xff]
        %v482 = vld [vmem:[#allocation8 + $0x18] sm:$0xff]
        %v483 = vld [vmem:[#allocation8 + $0x20] sm:$0xff]
        %v484 = vld [vmem:[#allocation8 + $0x28] sm:$0xff]
        %v485 = vld [vmem:[#allocation8 + $0x30] sm:$0xff]
        %v486 = vld [vmem:[#allocation8 + $0x38] sm:$0xff]
        %v487 = vld [vmem:[#allocation8 + $0x40] sm:$0xff]
        %v488 = vld [vmem:[#allocation8 + $0x48] sm:$0xff]
        %v489 = vld [vmem:[#allocation8 + $0x50] sm:$0xff]
        %v490 = vld [vmem:[#allocation8 + $0x58] sm:$0xff]
        %v491 = vld [vmem:[#allocation8 + $0x60] sm:$0xff]
        %v492 = vld [vmem:[#allocation8 + $0x68] sm:$0xff]
        %v493 = vld [vmem:[#allocation8 + $0x70] sm:$0xff]
        %v494 = vld [vmem:[#allocation8 + $0x78] sm:$0xff]
        %v495 = vlaneseq
        %v496 = vshrl.u32 %v495, 7
        %v497 = vsub.s32 0, %v496
        %v498 = vrot.slane %v454, %v497
        %499 = vmatprep.subr.mxu0 0.0
        %500 = vmatpush1.msra.mxu0 %v494
        %501 = vmatprep.subr.mxu0 0.0
        %502 = vmatpush1.msra.mxu0 %v493
        %503 = vmatprep.subr.mxu0 0.0
        %504 = vmatpush1.msra.mxu0 %v492
        %505 = vmatprep.subr.mxu0 0.0
        %506 = vmatpush1.msra.mxu0 %v491
        %507 = vmatprep.subr.mxu0 0.0
        %508 = vmatpush1.msra.mxu0 %v490
        %509 = vmatprep.subr.mxu0 0.0
        %510 = vmatpush1.msra.mxu0 %v489
        %511 = vmatprep.subr.mxu0 0.0
        %512 = vmatpush1.msra.mxu0 %v488
        %513 = vmatprep.subr.mxu0 0.0
        %514 = vmatpush1.msra.mxu0 %v487
        %515 = vmatprep.subr.mxu0 0.0
        %516 = vmatpush1.msra.mxu0 %v486
        %517 = vmatprep.subr.mxu0 0.0
        %518 = vmatpush1.msra.mxu0 %v485
        %519 = vmatprep.subr.mxu0 0.0
        %520 = vmatpush1.msra.mxu0 %v484
        %521 = vmatprep.subr.mxu0 0.0
        %522 = vmatpush1.msra.mxu0 %v483
        %523 = vmatprep.subr.mxu0 0.0
        %524 = vmatpush1.msra.mxu0 %v482
        %525 = vmatprep.subr.mxu0 0.0
        %526 = vmatpush1.msra.mxu0 %v481
        %527 = vmatprep.subr.mxu0 0.0
        %528 = vmatpush1.msra.mxu0 %v480
        %529 = vmatprep.subr.mxu0 0.0
        %530 = vmatpush1.msra.mxu0 %v479
        %531 = vmatprep.subr.mxu0 0.0
        %532 = vmatpush2.msra.mxu0 0.0
        %533 = vmatprep.subr.mxu0 0.0
        %534 = vmatpush2.msra.mxu0 0.0
        %535 = vmatprep.subr.mxu0 0.0
        %536 = vmatpush2.msra.mxu0 0.0
        %537 = vmatprep.subr.mxu0 0.0
        %538 = vmatpush2.msra.mxu0 0.0
        %539 = vmatprep.subr.mxu0 0.0
        %540 = vmatpush2.msra.mxu0 0.0
        %541 = vmatprep.subr.mxu0 0.0
        %542 = vmatpush2.msra.mxu0 0.0
        %543 = vmatprep.subr.mxu0 0.0
        %544 = vmatpush2.msra.mxu0 0.0
        %545 = vmatprep.subr.mxu0 0.0
        %546 = vmatpush2.msra.mxu0 0.0
        %547 = vmatprep.subr.mxu0 0.0
        %548 = vmatpush2.msra.mxu0 0.0
        %549 = vmatprep.subr.mxu0 0.0
        %550 = vmatpush2.msra.mxu0 0.0
        %551 = vmatprep.subr.mxu0 0.0
        %552 = vmatpush2.msra.mxu0 0.0
        %553 = vmatprep.subr.mxu0 0.0
        %554 = vmatpush2.msra.mxu0 0.0
        %555 = vmatprep.subr.mxu0 0.0
        %556 = vmatpush2.msra.mxu0 0.0
        %557 = vmatprep.subr.mxu0 0.0
        %558 = vmatpush2.msra.mxu0 0.0
        %559 = vmatprep.subr.mxu0 0.0
        %560 = vmatpush2.msra.mxu0 0.0
        %561 = vmatprep.subr.mxu0 0.0
        %562 = vmatpush2.msra.mxu0 0.0
        %563 = vmatprep.mubr.f32.mxu0 0.0
        %564 = vmatmul.mubr.f32.gmra.mxu0 %v478
        %v565 = vpop.f32.mrf.mxu0
        %v566 = vadd.f32 %v498, %v565
        %v567 = vpop.f32.mrf.mxu0
        %568 = vdwg.mxu0
        %v569 = vld [vmem:[#allocation10] sm:$0xff]
        %v570 = vld [vmem:[#allocation10 + $0x8] sm:$0xff]
        %v571 = vld [vmem:[#allocation10 + $0x10] sm:$0xff]
        %v572 = vld [vmem:[#allocation10 + $0x18] sm:$0xff]
        %v573 = vld [vmem:[#allocation10 + $0x20] sm:$0xff]
        %v574 = vld [vmem:[#allocation10 + $0x28] sm:$0xff]
        %v575 = vld [vmem:[#allocation10 + $0x30] sm:$0xff]
        %v576 = vld [vmem:[#allocation10 + $0x38] sm:$0xff]
        %v577 = vld [vmem:[#allocation10 + $0x40] sm:$0xff]
        %v578 = vld [vmem:[#allocation10 + $0x48] sm:$0xff]
        %v579 = vld [vmem:[#allocation10 + $0x50] sm:$0xff]
        %v580 = vld [vmem:[#allocation10 + $0x58] sm:$0xff]
        %v581 = vld [vmem:[#allocation10 + $0x60] sm:$0xff]
        %v582 = vld [vmem:[#allocation10 + $0x68] sm:$0xff]
        %v583 = vld [vmem:[#allocation10 + $0x70] sm:$0xff]
        %v584 = vld [vmem:[#allocation10 + $0x78] sm:$0xff]
        %v585 = vld [vmem:[#allocation10 + $0x80] sm:$0xff]
        %v586 = vld [vmem:[#allocation10 + $0x88] sm:$0xff]
        %v587 = vld [vmem:[#allocation10 + $0x90] sm:$0xff]
        %v588 = vld [vmem:[#allocation10 + $0x98] sm:$0xff]
        %v589 = vld [vmem:[#allocation10 + $0xa0] sm:$0xff]
        %v590 = vld [vmem:[#allocation10 + $0xa8] sm:$0xff]
        %v591 = vld [vmem:[#allocation10 + $0xb0] sm:$0xff]
        %v592 = vld [vmem:[#allocation10 + $0xb8] sm:$0xff]
        %v593 = vld [vmem:[#allocation10 + $0xc0] sm:$0xff]
        %v594 = vld [vmem:[#allocation10 + $0xc8] sm:$0xff]
        %v595 = vld [vmem:[#allocation10 + $0xd0] sm:$0xff]
        %v596 = vld [vmem:[#allocation10 + $0xd8] sm:$0xff]
        %v597 = vld [vmem:[#allocation10 + $0xe0] sm:$0xff]
        %v598 = vld [vmem:[#allocation10 + $0xe8] sm:$0xff]
        %v599 = vld [vmem:[#allocation10 + $0xf0] sm:$0xff]
        %v600 = vld [vmem:[#allocation10 + $0xf8] sm:$0xff]
        %601 = vmatprep.subr.mxu0 %v600
        %602 = vmatpush1.msra.mxu0 %v599
        %603 = vmatprep.subr.mxu0 %v598
        %604 = vmatpush1.msra.mxu0 %v597
        %605 = vmatprep.subr.mxu0 %v596
        %606 = vmatpush1.msra.mxu0 %v595
        %607 = vmatprep.subr.mxu0 %v594
        %608 = vmatpush1.msra.mxu0 %v593
        %609 = vmatprep.subr.mxu0 %v592
        %610 = vmatpush1.msra.mxu0 %v591
        %611 = vmatprep.subr.mxu0 %v590
        %612 = vmatpush1.msra.mxu0 %v589
        %613 = vmatprep.subr.mxu0 %v588
        %614 = vmatpush1.msra.mxu0 %v587
        %615 = vmatprep.subr.mxu0 %v586
        %616 = vmatpush1.msra.mxu0 %v585
        %617 = vmatprep.subr.mxu0 %v584
        %618 = vmatpush1.msra.mxu0 %v583
        %619 = vmatprep.subr.mxu0 %v582
        %620 = vmatpush1.msra.mxu0 %v581
        %621 = vmatprep.subr.mxu0 %v580
        %622 = vmatpush1.msra.mxu0 %v579
        %623 = vmatprep.subr.mxu0 %v578
        %624 = vmatpush1.msra.mxu0 %v577
        %625 = vmatprep.subr.mxu0 %v576
        %626 = vmatpush1.msra.mxu0 %v575
        %627 = vmatprep.subr.mxu0 %v574
        %628 = vmatpush1.msra.mxu0 %v573
        %629 = vmatprep.subr.mxu0 %v572
        %630 = vmatpush1.msra.mxu0 %v571
        %631 = vmatprep.subr.mxu0 %v570
        %632 = vmatpush1.msra.mxu0 %v569
        %633 = vmatprep.subr.mxu0 0.0
        %634 = vmatpush2.msra.mxu0 0.0
        %635 = vmatprep.subr.mxu0 0.0
        %636 = vmatpush2.msra.mxu0 0.0
        %637 = vmatprep.subr.mxu0 0.0
        %638 = vmatpush2.msra.mxu0 0.0
        %639 = vmatprep.subr.mxu0 0.0
        %640 = vmatpush2.msra.mxu0 0.0
        %641 = vmatprep.subr.mxu0 0.0
        %642 = vmatpush2.msra.mxu0 0.0
        %643 = vmatprep.subr.mxu0 0.0
        %644 = vmatpush2.msra.mxu0 0.0
        %645 = vmatprep.subr.mxu0 0.0
        %646 = vmatpush2.msra.mxu0 0.0
        %647 = vmatprep.subr.mxu0 0.0
        %648 = vmatpush2.msra.mxu0 0.0
        %649 = vmatprep.subr.mxu0 0.0
        %650 = vmatpush2.msra.mxu0 0.0
        %651 = vmatprep.subr.mxu0 0.0
        %652 = vmatpush2.msra.mxu0 0.0
        %653 = vmatprep.subr.mxu0 0.0
        %654 = vmatpush2.msra.mxu0 0.0
        %655 = vmatprep.subr.mxu0 0.0
        %656 = vmatpush2.msra.mxu0 0.0
        %657 = vmatprep.subr.mxu0 0.0
        %658 = vmatpush2.msra.mxu0 0.0
        %659 = vmatprep.subr.mxu0 0.0
        %660 = vmatpush2.msra.mxu0 0.0
        %661 = vmatprep.subr.mxu0 0.0
        %662 = vmatpush2.msra.mxu0 0.0
        %663 = vmatprep.subr.mxu0 0.0
        %664 = vmatpush2.msra.mxu0 0.0
        %665 = vmatprep.mubr.f32.mxu0 0.0
        %666 = vmatmul.mubr.f32.gmra.mxu0 %v452
        %v667 = vpop.f32.mrf.mxu0
        %v668 = vadd.f32 0.0, %v667
        %v669 = vpop.f32.mrf.mxu0
        %v670 = vadd.f32 0.0, %v669
        %671 = vdwg.mxu0
        %v672 = vlaneseq
        %v673 = vshrl.u32 %v672, 7
        %v674 = vsub.s32 1, %v673
        %v675 = vrot.slane %v454, %v674
        %v676 = vadd.f32 %v668, %v675
        %v677 = vlaneseq
        %v678 = vshrl.u32 %v677, 7
        %v679 = vsub.s32 2, %v678
        %v680 = vrot.slane %v454, %v679
        %v681 = vadd.f32 %v670, %v680
        %683 = vrot.lane.b32.xlu0 %v566, 64
        %v684 = vpop.permute.xlu0 %683
        %v686 = vcombine.high %v566, 0.0
        %v688 = vunpack.c.l.s4 1983009808
        %v689 = vunpack.c.0.s8 %v688
        %v690 = vlaneseq
        %v691 = vshrl.u32 %v690, 7
        %v692 = vsub.s32 %v689, %v691
        %v693 = vrot.slane %v566, %v692
        %v695 = vunpack.c.l.s4 1983009808
        %v696 = vunpack.c.0.s8 %v695
        %v697 = vlaneseq
        %v698 = vshrl.u32 %v697, 7
        %v699 = vsub.s32 %v696, %v698
        %v700 = vrot.slane %v686, %v699
        %v701 = vcombine.high %v684, 0.0
        %v703 = vunpack.c.l.s4 1983009808
        %v704 = vunpack.c.0.s8 %v703
        %v705 = vlaneseq
        %v706 = vshrl.u32 %v705, 7
        %v707 = vsub.s32 %v704, %v706
        %v708 = vrot.slane %v684, %v707
        %v710 = vunpack.c.l.s4 1983009808
        %v711 = vunpack.c.0.s8 %v710
        %v712 = vlaneseq
        %v713 = vshrl.u32 %v712, 7
        %v714 = vsub.s32 %v711, %v713
        %v715 = vrot.slane %v701, %v714
        %v716 = vcombine.low %v693, %v708
        %v717 = vcombine.high %v693, %v708
        %v719 = vunpack.c.l.s4 1934713408
        %v720 = vunpack.c.0.s8 %v719
        %v721 = vlaneseq
        %v722 = vshrl.u32 %v721, 7
        %v723 = vsub.s32 %v720, %v722
        %v724 = vrot.slane %v716, %v723
        %v726 = vunpack.c.l.s4 1934713408
        %v727 = vunpack.c.0.s8 %v726
        %v728 = vlaneseq
        %v729 = vshrl.u32 %v728, 7
        %v730 = vsub.s32 %v727, %v729
        %v731 = vrot.slane %v717, %v730
        %v732 = vcombine.low %v700, %v715
        %v733 = vcombine.high %v700, %v715
        %v735 = vunpack.c.l.s4 1934713408
        %v736 = vunpack.c.0.s8 %v735
        %v737 = vlaneseq
        %v738 = vshrl.u32 %v737, 7
        %v739 = vsub.s32 %v736, %v738
        %v740 = vrot.slane %v732, %v739
        %v742 = vunpack.c.l.s4 1934713408
        %v743 = vunpack.c.0.s8 %v742
        %v744 = vlaneseq
        %v745 = vshrl.u32 %v744, 7
        %v746 = vsub.s32 %v743, %v745
        %v747 = vrot.slane %v733, %v746
        %v748 = vcombine.high %v724, 0.0
        %v749 = vcombine.high %v731, 0.0
        %v750 = vcombine.high %v740, 0.0
        %v751 = vcombine.high %v747, 0.0
        %v752 = vcombine.low %v724, %v731
        %v754 = vunpack.c.l.s4 1983009808
        %v755 = vunpack.c.0.s8 %v754
        %v756 = vlaneseq
        %v757 = vshrl.u32 %v756, 7
        %v758 = vsub.s32 %v755, %v757
        %v759 = vrot.slane %v752, %v758
        %v760 = vcombine.low %v748, %v749
        %v762 = vunpack.c.l.s4 1983009808
        %v763 = vunpack.c.0.s8 %v762
        %v764 = vlaneseq
        %v765 = vshrl.u32 %v764, 7
        %v766 = vsub.s32 %v763, %v765
        %v767 = vrot.slane %v760, %v766
        %v768 = vcombine.low %v740, %v747
        %v770 = vunpack.c.l.s4 1983009808
        %v771 = vunpack.c.0.s8 %v770
        %v772 = vlaneseq
        %v773 = vshrl.u32 %v772, 7
        %v774 = vsub.s32 %v771, %v773
        %v775 = vrot.slane %v768, %v774
        %v776 = vcombine.low %v750, %v751
        %v778 = vunpack.c.l.s4 1983009808
        %v779 = vunpack.c.0.s8 %v778
        %v780 = vlaneseq
        %v781 = vshrl.u32 %v780, 7
        %v782 = vsub.s32 %v779, %v781
        %v783 = vrot.slane %v776, %v782
        %v784 = vcombine.low %v759, %v767
        %v786 = vunpack.c.l.s4 1934713408
        %v787 = vunpack.c.0.s8 %v786
        %v788 = vlaneseq
        %v789 = vshrl.u32 %v788, 7
        %v790 = vsub.s32 %v787, %v789
        %v791 = vrot.slane %v784, %v790
        %v792 = vcombine.low %v775, %v783
        %v794 = vunpack.c.l.s4 1934713408
        %v795 = vunpack.c.0.s8 %v794
        %v796 = vlaneseq
        %v797 = vshrl.u32 %v796, 7
        %v798 = vsub.s32 %v795, %v797
        %v799 = vrot.slane %v792, %v798
        %v800 = vcombine.low %v791, %v799
        %v801 = vcombine.high %v791, %v799
        %803 = vrot.lane.b32.xlu0 %v676, 64
        %v804 = vpop.permute.xlu0 %803
        %v806 = vcombine.high %v676, 0.0
        %v808 = vunpack.c.l.s4 1983009808
        %v809 = vunpack.c.0.s8 %v808
        %v810 = vlaneseq
        %v811 = vshrl.u32 %v810, 7
        %v812 = vsub.s32 %v809, %v811
        %v813 = vrot.slane %v676, %v812
        %v815 = vunpack.c.l.s4 1983009808
        %v816 = vunpack.c.0.s8 %v815
        %v817 = vlaneseq
        %v818 = vshrl.u32 %v817, 7
        %v819 = vsub.s32 %v816, %v818
        %v820 = vrot.slane %v806, %v819
        %v821 = vcombine.high %v804, 0.0
        %v823 = vunpack.c.l.s4 1983009808
        %v824 = vunpack.c.0.s8 %v823
        %v825 = vlaneseq
        %v826 = vshrl.u32 %v825, 7
        %v827 = vsub.s32 %v824, %v826
        %v828 = vrot.slane %v804, %v827
        %v830 = vunpack.c.l.s4 1983009808
        %v831 = vunpack.c.0.s8 %v830
        %v832 = vlaneseq
        %v833 = vshrl.u32 %v832, 7
        %v834 = vsub.s32 %v831, %v833
        %v835 = vrot.slane %v821, %v834
        %v836 = vcombine.low %v813, %v828
        %v837 = vcombine.high %v813, %v828
        %v839 = vunpack.c.l.s4 1934713408
        %v840 = vunpack.c.0.s8 %v839
        %v841 = vlaneseq
        %v842 = vshrl.u32 %v841, 7
        %v843 = vsub.s32 %v840, %v842
        %v844 = vrot.slane %v836, %v843
        %v846 = vunpack.c.l.s4 1934713408
        %v847 = vunpack.c.0.s8 %v846
        %v848 = vlaneseq
        %v849 = vshrl.u32 %v848, 7
        %v850 = vsub.s32 %v847, %v849
        %v851 = vrot.slane %v837, %v850
        %v852 = vcombine.low %v820, %v835
        %v853 = vcombine.high %v820, %v835
        %v855 = vunpack.c.l.s4 1934713408
        %v856 = vunpack.c.0.s8 %v855
        %v857 = vlaneseq
        %v858 = vshrl.u32 %v857, 7
        %v859 = vsub.s32 %v856, %v858
        %v860 = vrot.slane %v852, %v859
        %v862 = vunpack.c.l.s4 1934713408
        %v863 = vunpack.c.0.s8 %v862
        %v864 = vlaneseq
        %v865 = vshrl.u32 %v864, 7
        %v866 = vsub.s32 %v863, %v865
        %v867 = vrot.slane %v853, %v866
        %v868 = vcombine.high %v844, 0.0
        %v869 = vcombine.high %v851, 0.0
        %v870 = vcombine.high %v860, 0.0
        %v871 = vcombine.high %v867, 0.0
        %v872 = vcombine.low %v844, %v851
        %v874 = vunpack.c.l.s4 1983009808
        %v875 = vunpack.c.0.s8 %v874
        %v876 = vlaneseq
        %v877 = vshrl.u32 %v876, 7
        %v878 = vsub.s32 %v875, %v877
        %v879 = vrot.slane %v872, %v878
        %v880 = vcombine.low %v868, %v869
        %v882 = vunpack.c.l.s4 1983009808
        %v883 = vunpack.c.0.s8 %v882
        %v884 = vlaneseq
        %v885 = vshrl.u32 %v884, 7
        %v886 = vsub.s32 %v883, %v885
        %v887 = vrot.slane %v880, %v886
        %v888 = vcombine.low %v860, %v867
        %v890 = vunpack.c.l.s4 1983009808
        %v891 = vunpack.c.0.s8 %v890
        %v892 = vlaneseq
        %v893 = vshrl.u32 %v892, 7
        %v894 = vsub.s32 %v891, %v893
        %v895 = vrot.slane %v888, %v894
        %v896 = vcombine.low %v870, %v871
        %v898 = vunpack.c.l.s4 1983009808
        %v899 = vunpack.c.0.s8 %v898
        %v900 = vlaneseq
        %v901 = vshrl.u32 %v900, 7
        %v902 = vsub.s32 %v899, %v901
        %v903 = vrot.slane %v896, %v902
        %v904 = vcombine.low %v879, %v887
        %v906 = vunpack.c.l.s4 1934713408
        %v907 = vunpack.c.0.s8 %v906
        %v908 = vlaneseq
        %v909 = vshrl.u32 %v908, 7
        %v910 = vsub.s32 %v907, %v909
        %v911 = vrot.slane %v904, %v910
        %v912 = vcombine.low %v895, %v903
        %v914 = vunpack.c.l.s4 1934713408
        %v915 = vunpack.c.0.s8 %v914
        %v916 = vlaneseq
        %v917 = vshrl.u32 %v916, 7
        %v918 = vsub.s32 %v915, %v917
        %v919 = vrot.slane %v912, %v918
        %v920 = vcombine.low %v911, %v919
        %v921 = vcombine.high %v911, %v919
        %923 = vrot.lane.b32.xlu0 %v681, 64
        %v924 = vpop.permute.xlu0 %923
        %v926 = vcombine.high %v681, 0.0
        %v928 = vunpack.c.l.s4 1983009808
        %v929 = vunpack.c.0.s8 %v928
        %v930 = vlaneseq
        %v931 = vshrl.u32 %v930, 7
        %v932 = vsub.s32 %v929, %v931
        %v933 = vrot.slane %v681, %v932
        %v935 = vunpack.c.l.s4 1983009808
        %v936 = vunpack.c.0.s8 %v935
        %v937 = vlaneseq
        %v938 = vshrl.u32 %v937, 7
        %v939 = vsub.s32 %v936, %v938
        %v940 = vrot.slane %v926, %v939
        %v941 = vcombine.high %v924, 0.0
        %v943 = vunpack.c.l.s4 1983009808
        %v944 = vunpack.c.0.s8 %v943
        %v945 = vlaneseq
        %v946 = vshrl.u32 %v945, 7
        %v947 = vsub.s32 %v944, %v946
        %v948 = vrot.slane %v924, %v947
        %v950 = vunpack.c.l.s4 1983009808
        %v951 = vunpack.c.0.s8 %v950
        %v952 = vlaneseq
        %v953 = vshrl.u32 %v952, 7
        %v954 = vsub.s32 %v951, %v953
        %v955 = vrot.slane %v941, %v954
        %v956 = vcombine.low %v933, %v948
        %v957 = vcombine.high %v933, %v948
        %v959 = vunpack.c.l.s4 1934713408
        %v960 = vunpack.c.0.s8 %v959
        %v961 = vlaneseq
        %v962 = vshrl.u32 %v961, 7
        %v963 = vsub.s32 %v960, %v962
        %v964 = vrot.slane %v956, %v963
        %v966 = vunpack.c.l.s4 1934713408
        %v967 = vunpack.c.0.s8 %v966
        %v968 = vlaneseq
        %v969 = vshrl.u32 %v968, 7
        %v970 = vsub.s32 %v967, %v969
        %v971 = vrot.slane %v957, %v970
        %v972 = vcombine.low %v940, %v955
        %v973 = vcombine.high %v940, %v955
        %v975 = vunpack.c.l.s4 1934713408
        %v976 = vunpack.c.0.s8 %v975
        %v977 = vlaneseq
        %v978 = vshrl.u32 %v977, 7
        %v979 = vsub.s32 %v976, %v978
        %v980 = vrot.slane %v972, %v979
        %v982 = vunpack.c.l.s4 1934713408
        %v983 = vunpack.c.0.s8 %v982
        %v984 = vlaneseq
        %v985 = vshrl.u32 %v984, 7
        %v986 = vsub.s32 %v983, %v985
        %v987 = vrot.slane %v973, %v986
        %v988 = vcombine.high %v964, 0.0
        %v989 = vcombine.high %v971, 0.0
        %v990 = vcombine.high %v980, 0.0
        %v991 = vcombine.high %v987, 0.0
        %v992 = vcombine.low %v964, %v971
        %v994 = vunpack.c.l.s4 1983009808
        %v995 = vunpack.c.0.s8 %v994
        %v996 = vlaneseq
        %v997 = vshrl.u32 %v996, 7
        %v998 = vsub.s32 %v995, %v997
        %v999 = vrot.slane %v992, %v998
        %v1000 = vcombine.low %v988, %v989
        %v1002 = vunpack.c.l.s4 1983009808
        %v1003 = vunpack.c.0.s8 %v1002
        %v1004 = vlaneseq
        %v1005 = vshrl.u32 %v1004, 7
        %v1006 = vsub.s32 %v1003, %v1005
        %v1007 = vrot.slane %v1000, %v1006
        %v1008 = vcombine.low %v980, %v987
        %v1010 = vunpack.c.l.s4 1983009808
        %v1011 = vunpack.c.0.s8 %v1010
        %v1012 = vlaneseq
        %v1013 = vshrl.u32 %v1012, 7
        %v1014 = vsub.s32 %v1011, %v1013
        %v1015 = vrot.slane %v1008, %v1014
        %v1016 = vcombine.low %v990, %v991
        %v1018 = vunpack.c.l.s4 1983009808
        %v1019 = vunpack.c.0.s8 %v1018
        %v1020 = vlaneseq
        %v1021 = vshrl.u32 %v1020, 7
        %v1022 = vsub.s32 %v1019, %v1021
        %v1023 = vrot.slane %v1016, %v1022
        %v1024 = vcombine.low %v999, %v1007
        %v1026 = vunpack.c.l.s4 1934713408
        %v1027 = vunpack.c.0.s8 %v1026
        %v1028 = vlaneseq
        %v1029 = vshrl.u32 %v1028, 7
        %v1030 = vsub.s32 %v1027, %v1029
        %v1031 = vrot.slane %v1024, %v1030
        %v1032 = vcombine.low %v1015, %v1023
        %v1034 = vunpack.c.l.s4 1934713408
        %v1035 = vunpack.c.0.s8 %v1034
        %v1036 = vlaneseq
        %v1037 = vshrl.u32 %v1036, 7
        %v1038 = vsub.s32 %v1035, %v1037
        %v1039 = vrot.slane %v1032, %v1038
        %v1040 = vcombine.low %v1031, %v1039
        %v1041 = vcombine.high %v1031, %v1039
        %vm1042 = vcmask 523264
        %v1044 = vsel %vm1042, %v800, 0
        %v1047 = vsel %vm1042, %v920, 0
        %1049 = vmatprep.subr.mxu0 0.0
        %1050 = vmatpush1.xpose.msra.mxu0 0.0
        %1051 = vmatprep.subr.mxu0 0.0
        %1052 = vmatpush1.xpose.msra.mxu0 0.0
        %1053 = vmatprep.subr.mxu0 0.0
        %1054 = vmatpush1.xpose.msra.mxu0 0.0
        %1055 = vmatprep.subr.mxu0 0.0
        %1056 = vmatpush1.xpose.msra.mxu0 0.0
        %1057 = vmatprep.subr.mxu0 0.0
        %1058 = vmatpush1.xpose.msra.mxu0 0.0
        %1059 = vmatprep.subr.mxu0 0.0
        %1060 = vmatpush1.xpose.msra.mxu0 0.0
        %1061 = vmatprep.subr.mxu0 0.0
        %1062 = vmatpush1.xpose.msra.mxu0 0.0
        %1063 = vmatprep.subr.mxu0 0.0
        %1064 = vmatpush1.xpose.msra.mxu0 0.0
        %1065 = vmatprep.subr.mxu0 0.0
        %1066 = vmatpush1.xpose.msra.mxu0 0.0
        %1067 = vmatprep.subr.mxu0 0.0
        %1068 = vmatpush1.xpose.msra.mxu0 0.0
        %1069 = vmatprep.subr.mxu0 0.0
        %1070 = vmatpush1.xpose.msra.mxu0 0.0
        %1071 = vmatprep.subr.mxu0 0.0
        %1072 = vmatpush1.xpose.msra.mxu0 0.0
        %1073 = vmatprep.subr.mxu0 0.0
        %1074 = vmatpush1.xpose.msra.mxu0 0.0
        %1075 = vmatprep.subr.mxu0 0.0
        %1076 = vmatpush1.xpose.msra.mxu0 0.0
        %1077 = vmatprep.subr.mxu0 0.0
        %1078 = vmatpush1.xpose.msra.mxu0 0.0
        %1079 = vmatprep.subr.mxu0 0.0
        %1080 = vmatpush1.xpose.msra.mxu0 %v1047
        %1081 = vmatprep.subr.mxu0 0.0
        %1082 = vmatpush2.xpose.msra.mxu0 0.0
        %1083 = vmatprep.subr.mxu0 0.0
        %1084 = vmatpush2.xpose.msra.mxu0 0.0
        %1085 = vmatprep.subr.mxu0 0.0
        %1086 = vmatpush2.xpose.msra.mxu0 0.0
        %1087 = vmatprep.subr.mxu0 0.0
        %1088 = vmatpush2.xpose.msra.mxu0 0.0
        %1089 = vmatprep.subr.mxu0 0.0
        %1090 = vmatpush2.xpose.msra.mxu0 0.0
        %1091 = vmatprep.subr.mxu0 0.0
        %1092 = vmatpush2.xpose.msra.mxu0 0.0
        %1093 = vmatprep.subr.mxu0 0.0
        %1094 = vmatpush2.xpose.msra.mxu0 0.0
        %1095 = vmatprep.subr.mxu0 0.0
        %1096 = vmatpush2.xpose.msra.mxu0 0.0
        %1097 = vmatprep.subr.mxu0 0.0
        %1098 = vmatpush2.xpose.msra.mxu0 0.0
        %1099 = vmatprep.subr.mxu0 0.0
        %1100 = vmatpush2.xpose.msra.mxu0 0.0
        %1101 = vmatprep.subr.mxu0 0.0
        %1102 = vmatpush2.xpose.msra.mxu0 0.0
        %1103 = vmatprep.subr.mxu0 0.0
        %1104 = vmatpush2.xpose.msra.mxu0 0.0
        %1105 = vmatprep.subr.mxu0 0.0
        %1106 = vmatpush2.xpose.msra.mxu0 0.0
        %1107 = vmatprep.subr.mxu0 0.0
        %1108 = vmatpush2.xpose.msra.mxu0 0.0
        %1109 = vmatprep.subr.mxu0 0.0
        %1110 = vmatpush2.xpose.msra.mxu0 0.0
        %1111 = vmatprep.subr.mxu0 0.0
        %1112 = vmatpush2.xpose.msra.mxu0 0.0
        %1113 = vmatprep.mubr.f32.mxu0 0.0
        %1114 = vmatmul.mubr.f32.gmra.mxu0 %v1044
        %v1115 = vpop.f32.mrf.mxu0
        %v1116 = vadd.f32 0.0, %v1115
        %v1117 = vpop.f32.mrf.mxu0
        %1118 = vdwg.mxu0
        %v1120 = vsel %vm1042, %v801, 0
        %v1123 = vsel %vm1042, %v921, 0
        %1125 = vmatprep.subr.mxu0 0.0
        %1126 = vmatpush1.xpose.msra.mxu0 0.0
        %1127 = vmatprep.subr.mxu0 0.0
        %1128 = vmatpush1.xpose.msra.mxu0 0.0
        %1129 = vmatprep.subr.mxu0 0.0
        %1130 = vmatpush1.xpose.msra.mxu0 0.0
        %1131 = vmatprep.subr.mxu0 0.0
        %1132 = vmatpush1.xpose.msra.mxu0 0.0
        %1133 = vmatprep.subr.mxu0 0.0
        %1134 = vmatpush1.xpose.msra.mxu0 0.0
        %1135 = vmatprep.subr.mxu0 0.0
        %1136 = vmatpush1.xpose.msra.mxu0 0.0
        %1137 = vmatprep.subr.mxu0 0.0
        %1138 = vmatpush1.xpose.msra.mxu0 0.0
        %1139 = vmatprep.subr.mxu0 0.0
        %1140 = vmatpush1.xpose.msra.mxu0 0.0
        %1141 = vmatprep.subr.mxu0 0.0
        %1142 = vmatpush1.xpose.msra.mxu0 0.0
        %1143 = vmatprep.subr.mxu0 0.0
        %1144 = vmatpush1.xpose.msra.mxu0 0.0
        %1145 = vmatprep.subr.mxu0 0.0
        %1146 = vmatpush1.xpose.msra.mxu0 0.0
        %1147 = vmatprep.subr.mxu0 0.0
        %1148 = vmatpush1.xpose.msra.mxu0 0.0
        %1149 = vmatprep.subr.mxu0 0.0
        %1150 = vmatpush1.xpose.msra.mxu0 0.0
        %1151 = vmatprep.subr.mxu0 0.0
        %1152 = vmatpush1.xpose.msra.mxu0 0.0
        %1153 = vmatprep.subr.mxu0 0.0
        %1154 = vmatpush1.xpose.msra.mxu0 0.0
        %1155 = vmatprep.subr.mxu0 0.0
        %1156 = vmatpush1.xpose.msra.mxu0 %v1123
        %1157 = vmatprep.subr.mxu0 0.0
        %1158 = vmatpush2.xpose.msra.mxu0 0.0
        %1159 = vmatprep.subr.mxu0 0.0
        %1160 = vmatpush2.xpose.msra.mxu0 0.0
        %1161 = vmatprep.subr.mxu0 0.0
        %1162 = vmatpush2.xpose.msra.mxu0 0.0
        %1163 = vmatprep.subr.mxu0 0.0
        %1164 = vmatpush2.xpose.msra.mxu0 0.0
        %1165 = vmatprep.subr.mxu0 0.0
        %1166 = vmatpush2.xpose.msra.mxu0 0.0
        %1167 = vmatprep.subr.mxu0 0.0
        %1168 = vmatpush2.xpose.msra.mxu0 0.0
        %1169 = vmatprep.subr.mxu0 0.0
        %1170 = vmatpush2.xpose.msra.mxu0 0.0
        %1171 = vmatprep.subr.mxu0 0.0
        %1172 = vmatpush2.xpose.msra.mxu0 0.0
        %1173 = vmatprep.subr.mxu0 0.0
        %1174 = vmatpush2.xpose.msra.mxu0 0.0
        %1175 = vmatprep.subr.mxu0 0.0
        %1176 = vmatpush2.xpose.msra.mxu0 0.0
        %1177 = vmatprep.subr.mxu0 0.0
        %1178 = vmatpush2.xpose.msra.mxu0 0.0
        %1179 = vmatprep.subr.mxu0 0.0
        %1180 = vmatpush2.xpose.msra.mxu0 0.0
        %1181 = vmatprep.subr.mxu0 0.0
        %1182 = vmatpush2.xpose.msra.mxu0 0.0
        %1183 = vmatprep.subr.mxu0 0.0
        %1184 = vmatpush2.xpose.msra.mxu0 0.0
        %1185 = vmatprep.subr.mxu0 0.0
        %1186 = vmatpush2.xpose.msra.mxu0 0.0
        %1187 = vmatprep.subr.mxu0 0.0
        %1188 = vmatpush2.xpose.msra.mxu0 0.0
        %1189 = vmatprep.mubr.f32.mxu0 0.0
        %1190 = vmatmul.mubr.f32.gmra.mxu0 %v1120
        %v1191 = vpop.f32.mrf.mxu0
        %v1192 = vadd.f32 0.0, %v1191
        %v1193 = vpop.f32.mrf.mxu0
        %1194 = vdwg.mxu0
        %v1195 = vlaneseq
        %v1196 = vshrl.u32 %v1195, 7
        %v1197 = vlaneseq
        %v1198 = vand.u32 %v1197, 127
        %vm1199 = vcmp.gt.s32.totalorder %v1198, %v1196
        %v1200 = vsel %vm1199, -1e+30, 0.0
        %v1201 = vadd.f32 %v1116, %v1200
        %v1202 = vadd.f32 %v1192, %v1200
        %v1203 = vld [vmem:[%s384] sm:$0x1]
        %v1205 = vlaneseq
        %v1206 = vshrl.u32 %v1205, 7
        %v1207 = vsub.s32 0, %v1206
        %v1208 = vrot.slane %v1203, %v1207
        %v1210 = vadd.f32 %v1201, %v1208
        %v1211 = vadd.f32 %v1202, %v1208
        %vm1212 = vcmask 64512
        %v1213 = vsel %vm1212, %v1210, -inf
        %1214 = vmax.xlane.f32.xlu0 %v1213
        %v1215 = vpop.xlane.xlu0 %1214
        %v1216 = vsel %vm1212, %v1211, -inf
        %1217 = vmax.xlane.f32.xlu0 %v1216
        %v1218 = vpop.xlane.xlu0 %1217
        %v1219 = vsub.f32 %v1210, %v1215
        %v1220 = vsub.f32 %v1211, %v1218
        %v1221 = vmul.f32 %v1219, 1.442695
        %v1222 = vpow.pop %v1221
        %v1223 = vmul.f32 %v1220, 1.442695
        %v1224 = vpow.pop %v1223
        %v1225 = vsel %vm1212, %v1222, 0.0
        %1226 = vadd.xlane.f32.xlu0 %v1225
        %v1227 = vpop.xlane.xlu0 %1226
        %v1228 = vsel %vm1212, %v1224, 0.0
        %1229 = vadd.xlane.f32.xlu0 %v1228
        %v1230 = vpop.xlane.xlu0 %1229
        %v1232 = vsel %vm1212, %v1222, 0
        %1234 = vmatprep.subr.mxu0 0.0
        %1235 = vmatpush1.msra.mxu0 0.0
        %1236 = vmatprep.subr.mxu0 0.0
        %1237 = vmatpush1.msra.mxu0 0.0
        %1238 = vmatprep.subr.mxu0 0.0
        %1239 = vmatpush1.msra.mxu0 0.0
        %1240 = vmatprep.subr.mxu0 0.0
        %1241 = vmatpush1.msra.mxu0 0.0
        %1242 = vmatprep.subr.mxu0 0.0
        %1243 = vmatpush1.msra.mxu0 0.0
        %1244 = vmatprep.subr.mxu0 0.0
        %1245 = vmatpush1.msra.mxu0 0.0
        %1246 = vmatprep.subr.mxu0 0.0
        %1247 = vmatpush1.msra.mxu0 0.0
        %1248 = vmatprep.subr.mxu0 0.0
        %1249 = vmatpush1.msra.mxu0 0.0
        %1250 = vmatprep.subr.mxu0 0.0
        %1251 = vmatpush1.msra.mxu0 0.0
        %1252 = vmatprep.subr.mxu0 0.0
        %1253 = vmatpush1.msra.mxu0 0.0
        %1254 = vmatprep.subr.mxu0 0.0
        %1255 = vmatpush1.msra.mxu0 0.0
        %1256 = vmatprep.subr.mxu0 0.0
        %1257 = vmatpush1.msra.mxu0 0.0
        %1258 = vmatprep.subr.mxu0 0.0
        %1259 = vmatpush1.msra.mxu0 0.0
        %1260 = vmatprep.subr.mxu0 0.0
        %1261 = vmatpush1.msra.mxu0 0.0
        %1262 = vmatprep.subr.mxu0 0.0
        %1263 = vmatpush1.msra.mxu0 0.0
        %1264 = vmatprep.subr.mxu0 0.0
        %1265 = vmatpush1.msra.mxu0 %v1040
        %1266 = vmatprep.subr.mxu0 0.0
        %1267 = vmatpush2.msra.mxu0 0.0
        %1268 = vmatprep.subr.mxu0 0.0
        %1269 = vmatpush2.msra.mxu0 0.0
        %1270 = vmatprep.subr.mxu0 0.0
        %1271 = vmatpush2.msra.mxu0 0.0
        %1272 = vmatprep.subr.mxu0 0.0
        %1273 = vmatpush2.msra.mxu0 0.0
        %1274 = vmatprep.subr.mxu0 0.0
        %1275 = vmatpush2.msra.mxu0 0.0
        %1276 = vmatprep.subr.mxu0 0.0
        %1277 = vmatpush2.msra.mxu0 0.0
        %1278 = vmatprep.subr.mxu0 0.0
        %1279 = vmatpush2.msra.mxu0 0.0
        %1280 = vmatprep.subr.mxu0 0.0
        %1281 = vmatpush2.msra.mxu0 0.0
        %1282 = vmatprep.subr.mxu0 0.0
        %1283 = vmatpush2.msra.mxu0 0.0
        %1284 = vmatprep.subr.mxu0 0.0
        %1285 = vmatpush2.msra.mxu0 0.0
        %1286 = vmatprep.subr.mxu0 0.0
        %1287 = vmatpush2.msra.mxu0 0.0
        %1288 = vmatprep.subr.mxu0 0.0
        %1289 = vmatpush2.msra.mxu0 0.0
        %1290 = vmatprep.subr.mxu0 0.0
        %1291 = vmatpush2.msra.mxu0 0.0
        %1292 = vmatprep.subr.mxu0 0.0
        %1293 = vmatpush2.msra.mxu0 0.0
        %1294 = vmatprep.subr.mxu0 0.0
        %1295 = vmatpush2.msra.mxu0 0.0
        %1296 = vmatprep.subr.mxu0 0.0
        %1297 = vmatpush2.msra.mxu0 0.0
        %1298 = vmatprep.mubr.f32.mxu0 0.0
        %1299 = vmatmul.mubr.f32.gmra.mxu0 %v1232
        %v1300 = vpop.f32.mrf.mxu0
        %v1301 = vadd.f32 0.0, %v1300
        %v1302 = vpop.f32.mrf.mxu0
        %1303 = vdwg.mxu0
        %v1305 = vsel %vm1212, %v1224, 0
        %1307 = vmatprep.subr.mxu0 0.0
        %1308 = vmatpush1.msra.mxu0 0.0
        %1309 = vmatprep.subr.mxu0 0.0
        %1310 = vmatpush1.msra.mxu0 0.0
        %1311 = vmatprep.subr.mxu0 0.0
        %1312 = vmatpush1.msra.mxu0 0.0
        %1313 = vmatprep.subr.mxu0 0.0
        %1314 = vmatpush1.msra.mxu0 0.0
        %1315 = vmatprep.subr.mxu0 0.0
        %1316 = vmatpush1.msra.mxu0 0.0
        %1317 = vmatprep.subr.mxu0 0.0
        %1318 = vmatpush1.msra.mxu0 0.0
        %1319 = vmatprep.subr.mxu0 0.0
        %1320 = vmatpush1.msra.mxu0 0.0
        %1321 = vmatprep.subr.mxu0 0.0
        %1322 = vmatpush1.msra.mxu0 0.0
        %1323 = vmatprep.subr.mxu0 0.0
        %1324 = vmatpush1.msra.mxu0 0.0
        %1325 = vmatprep.subr.mxu0 0.0
        %1326 = vmatpush1.msra.mxu0 0.0
        %1327 = vmatprep.subr.mxu0 0.0
        %1328 = vmatpush1.msra.mxu0 0.0
        %1329 = vmatprep.subr.mxu0 0.0
        %1330 = vmatpush1.msra.mxu0 0.0
        %1331 = vmatprep.subr.mxu0 0.0
        %1332 = vmatpush1.msra.mxu0 0.0
        %1333 = vmatprep.subr.mxu0 0.0
        %1334 = vmatpush1.msra.mxu0 0.0
        %1335 = vmatprep.subr.mxu0 0.0
        %1336 = vmatpush1.msra.mxu0 0.0
        %1337 = vmatprep.subr.mxu0 0.0
        %1338 = vmatpush1.msra.mxu0 %v1041
        %1339 = vmatprep.subr.mxu0 0.0
        %1340 = vmatpush2.msra.mxu0 0.0
        %1341 = vmatprep.subr.mxu0 0.0
        %1342 = vmatpush2.msra.mxu0 0.0
        %1343 = vmatprep.subr.mxu0 0.0
        %1344 = vmatpush2.msra.mxu0 0.0
        %1345 = vmatprep.subr.mxu0 0.0
        %1346 = vmatpush2.msra.mxu0 0.0
        %1347 = vmatprep.subr.mxu0 0.0
        %1348 = vmatpush2.msra.mxu0 0.0
        %1349 = vmatprep.subr.mxu0 0.0
        %1350 = vmatpush2.msra.mxu0 0.0
        %1351 = vmatprep.subr.mxu0 0.0
        %1352 = vmatpush2.msra.mxu0 0.0
        %1353 = vmatprep.subr.mxu0 0.0
        %1354 = vmatpush2.msra.mxu0 0.0
        %1355 = vmatprep.subr.mxu0 0.0
        %1356 = vmatpush2.msra.mxu0 0.0
        %1357 = vmatprep.subr.mxu0 0.0
        %1358 = vmatpush2.msra.mxu0 0.0
        %1359 = vmatprep.subr.mxu0 0.0
        %1360 = vmatpush2.msra.mxu0 0.0
        %1361 = vmatprep.subr.mxu0 0.0
        %1362 = vmatpush2.msra.mxu0 0.0
        %1363 = vmatprep.subr.mxu0 0.0
        %1364 = vmatpush2.msra.mxu0 0.0
        %1365 = vmatprep.subr.mxu0 0.0
        %1366 = vmatpush2.msra.mxu0 0.0
        %1367 = vmatprep.subr.mxu0 0.0
        %1368 = vmatpush2.msra.mxu0 0.0
        %1369 = vmatprep.subr.mxu0 0.0
        %1370 = vmatpush2.msra.mxu0 0.0
        %1371 = vmatprep.mubr.f32.mxu0 0.0
        %1372 = vmatmul.mubr.f32.gmra.mxu0 %v1305
        %v1373 = vpop.f32.mrf.mxu0
        %v1374 = vadd.f32 0.0, %v1373
        %v1375 = vpop.f32.mrf.mxu0
        %1376 = vdwg.mxu0
        %v1377 = vrcp.pop %v1227
        %v1378 = vrcp.pop %v1230
        %v1379 = vmul.f32 %v1301, %v1377
        %v1380 = vmul.f32 %v1374, %v1378
        %v1381 = vcombine.high %v1379, 0.0
        %v1383 = vunpack.c.l.s4 1983009808
        %v1384 = vunpack.c.0.s8 %v1383
        %v1385 = vlaneseq
        %v1386 = vshrl.u32 %v1385, 7
        %v1387 = vsub.s32 %v1384, %v1386
        %v1388 = vrot.slane %v1379, %v1387
        %v1390 = vunpack.c.l.s4 1983009808
        %v1391 = vunpack.c.0.s8 %v1390
        %v1392 = vlaneseq
        %v1393 = vshrl.u32 %v1392, 7
        %v1394 = vsub.s32 %v1391, %v1393
        %v1395 = vrot.slane %v1381, %v1394
        %v1396 = vcombine.high %v1380, 0.0
        %v1398 = vunpack.c.l.s4 1983009808
        %v1399 = vunpack.c.0.s8 %v1398
        %v1400 = vlaneseq
        %v1401 = vshrl.u32 %v1400, 7
        %v1402 = vsub.s32 %v1399, %v1401
        %v1403 = vrot.slane %v1380, %v1402
        %v1405 = vunpack.c.l.s4 1983009808
        %v1406 = vunpack.c.0.s8 %v1405
        %v1407 = vlaneseq
        %v1408 = vshrl.u32 %v1407, 7
        %v1409 = vsub.s32 %v1406, %v1408
        %v1410 = vrot.slane %v1396, %v1409
        %v1411 = vcombine.low %v1388, %v1403
        %v1412 = vcombine.high %v1388, %v1403
        %v1414 = vunpack.c.l.s4 1934713408
        %v1415 = vunpack.c.0.s8 %v1414
        %v1416 = vlaneseq
        %v1417 = vshrl.u32 %v1416, 7
        %v1418 = vsub.s32 %v1415, %v1417
        %v1419 = vrot.slane %v1411, %v1418
        %v1421 = vunpack.c.l.s4 1934713408
        %v1422 = vunpack.c.0.s8 %v1421
        %v1423 = vlaneseq
        %v1424 = vshrl.u32 %v1423, 7
        %v1425 = vsub.s32 %v1422, %v1424
        %v1426 = vrot.slane %v1412, %v1425
        %v1427 = vcombine.low %v1395, %v1410
        %v1428 = vcombine.high %v1395, %v1410
        %v1430 = vunpack.c.l.s4 1934713408
        %v1431 = vunpack.c.0.s8 %v1430
        %v1432 = vlaneseq
        %v1433 = vshrl.u32 %v1432, 7
        %v1434 = vsub.s32 %v1431, %v1433
        %v1435 = vrot.slane %v1427, %v1434
        %v1437 = vunpack.c.l.s4 1934713408
        %v1438 = vunpack.c.0.s8 %v1437
        %v1439 = vlaneseq
        %v1440 = vshrl.u32 %v1439, 7
        %v1441 = vsub.s32 %v1438, %v1440
        %v1442 = vrot.slane %v1428, %v1441
        %v1443 = vcombine.high %v1419, 0.0
        %v1444 = vcombine.high %v1426, 0.0
        %v1445 = vcombine.high %v1435, 0.0
        %v1446 = vcombine.high %v1442, 0.0
        %v1447 = vcombine.low %v1419, %v1426
        %v1449 = vunpack.c.l.s4 1983009808
        %v1450 = vunpack.c.0.s8 %v1449
        %v1451 = vlaneseq
        %v1452 = vshrl.u32 %v1451, 7
        %v1453 = vsub.s32 %v1450, %v1452
        %v1454 = vrot.slane %v1447, %v1453
        %v1455 = vcombine.low %v1443, %v1444
        %v1457 = vunpack.c.l.s4 1983009808
        %v1458 = vunpack.c.0.s8 %v1457
        %v1459 = vlaneseq
        %v1460 = vshrl.u32 %v1459, 7
        %v1461 = vsub.s32 %v1458, %v1460
        %v1462 = vrot.slane %v1455, %v1461
        %v1463 = vcombine.low %v1435, %v1442
        %v1465 = vunpack.c.l.s4 1983009808
        %v1466 = vunpack.c.0.s8 %v1465
        %v1467 = vlaneseq
        %v1468 = vshrl.u32 %v1467, 7
        %v1469 = vsub.s32 %v1466, %v1468
        %v1470 = vrot.slane %v1463, %v1469
        %v1471 = vcombine.low %v1445, %v1446
        %v1473 = vunpack.c.l.s4 1983009808
        %v1474 = vunpack.c.0.s8 %v1473
        %v1475 = vlaneseq
        %v1476 = vshrl.u32 %v1475, 7
        %v1477 = vsub.s32 %v1474, %v1476
        %v1478 = vrot.slane %v1471, %v1477
        %v1479 = vcombine.low %v1454, %v1462
        %v1481 = vunpack.c.l.s4 1934713408
        %v1482 = vunpack.c.0.s8 %v1481
        %v1483 = vlaneseq
        %v1484 = vshrl.u32 %v1483, 7
        %v1485 = vsub.s32 %v1482, %v1484
        %v1486 = vrot.slane %v1479, %v1485
        %v1487 = vcombine.low %v1470, %v1478
        %v1489 = vunpack.c.l.s4 1934713408
        %v1490 = vunpack.c.0.s8 %v1489
        %v1491 = vlaneseq
        %v1492 = vshrl.u32 %v1491, 7
        %v1493 = vsub.s32 %v1490, %v1492
        %v1494 = vrot.slane %v1487, %v1493
        %v1495 = vcombine.low %v1486, %v1494
        %v1496 = vcombine.high %v1486, %v1494
        %1498 = vrot.lane.b32.xlu0 %v1496, 64
        %v1499 = vpop.permute.xlu0 %1498
        %v1501 = vsel %vm1042, %v1495, %v1499
        %v1502 = vld [vmem:[#allocation11] sm:$0xff]
        %v1503 = vld [vmem:[#allocation11 + $0x8] sm:$0xff]
        %v1504 = vld [vmem:[#allocation11 + $0x10] sm:$0xff]
        %v1505 = vld [vmem:[#allocation11 + $0x18] sm:$0xff]
        %v1506 = vld [vmem:[#allocation11 + $0x20] sm:$0xff]
        %v1507 = vld [vmem:[#allocation11 + $0x28] sm:$0xff]
        %v1508 = vld [vmem:[#allocation11 + $0x30] sm:$0xff]
        %v1509 = vld [vmem:[#allocation11 + $0x38] sm:$0xff]
        %v1510 = vld [vmem:[#allocation11 + $0x40] sm:$0xff]
        %v1511 = vld [vmem:[#allocation11 + $0x48] sm:$0xff]
        %v1512 = vld [vmem:[#allocation11 + $0x50] sm:$0xff]
        %v1513 = vld [vmem:[#allocation11 + $0x58] sm:$0xff]
        %v1514 = vld [vmem:[#allocation11 + $0x60] sm:$0xff]
        %v1515 = vld [vmem:[#allocation11 + $0x68] sm:$0xff]
        %v1516 = vld [vmem:[#allocation11 + $0x70] sm:$0xff]
        %v1517 = vld [vmem:[#allocation11 + $0x78] sm:$0xff]
        %v1518 = vlaneseq
        %v1519 = vshrl.u32 %v1518, 7
        %v1520 = vsub.s32 0, %v1519
        %v1521 = vrot.slane %v455, %v1520
        %1522 = vmatprep.subr.mxu0 0.0
        %1523 = vmatpush1.msra.mxu0 %v1517
        %1524 = vmatprep.subr.mxu0 0.0
        %1525 = vmatpush1.msra.mxu0 %v1516
        %1526 = vmatprep.subr.mxu0 0.0
        %1527 = vmatpush1.msra.mxu0 %v1515
        %1528 = vmatprep.subr.mxu0 0.0
        %1529 = vmatpush1.msra.mxu0 %v1514
        %1530 = vmatprep.subr.mxu0 0.0
        %1531 = vmatpush1.msra.mxu0 %v1513
        %1532 = vmatprep.subr.mxu0 0.0
        %1533 = vmatpush1.msra.mxu0 %v1512
        %1534 = vmatprep.subr.mxu0 0.0
        %1535 = vmatpush1.msra.mxu0 %v1511
        %1536 = vmatprep.subr.mxu0 0.0
        %1537 = vmatpush1.msra.mxu0 %v1510
        %1538 = vmatprep.subr.mxu0 0.0
        %1539 = vmatpush1.msra.mxu0 %v1509
        %1540 = vmatprep.subr.mxu0 0.0
        %1541 = vmatpush1.msra.mxu0 %v1508
        %1542 = vmatprep.subr.mxu0 0.0
        %1543 = vmatpush1.msra.mxu0 %v1507
        %1544 = vmatprep.subr.mxu0 0.0
        %1545 = vmatpush1.msra.mxu0 %v1506
        %1546 = vmatprep.subr.mxu0 0.0
        %1547 = vmatpush1.msra.mxu0 %v1505
        %1548 = vmatprep.subr.mxu0 0.0
        %1549 = vmatpush1.msra.mxu0 %v1504
        %1550 = vmatprep.subr.mxu0 0.0
        %1551 = vmatpush1.msra.mxu0 %v1503
        %1552 = vmatprep.subr.mxu0 0.0
        %1553 = vmatpush1.msra.mxu0 %v1502
        %1554 = vmatprep.subr.mxu0 0.0
        %1555 = vmatpush2.msra.mxu0 0.0
        %1556 = vmatprep.subr.mxu0 0.0
        %1557 = vmatpush2.msra.mxu0 0.0
        %1558 = vmatprep.subr.mxu0 0.0
        %1559 = vmatpush2.msra.mxu0 0.0
        %1560 = vmatprep.subr.mxu0 0.0
        %1561 = vmatpush2.msra.mxu0 0.0
        %1562 = vmatprep.subr.mxu0 0.0
        %1563 = vmatpush2.msra.mxu0 0.0
        %1564 = vmatprep.subr.mxu0 0.0
        %1565 = vmatpush2.msra.mxu0 0.0
        %1566 = vmatprep.subr.mxu0 0.0
        %1567 = vmatpush2.msra.mxu0 0.0
        %1568 = vmatprep.subr.mxu0 0.0
        %1569 = vmatpush2.msra.mxu0 0.0
        %1570 = vmatprep.subr.mxu0 0.0
        %1571 = vmatpush2.msra.mxu0 0.0
        %1572 = vmatprep.subr.mxu0 0.0
        %1573 = vmatpush2.msra.mxu0 0.0
        %1574 = vmatprep.subr.mxu0 0.0
        %1575 = vmatpush2.msra.mxu0 0.0
        %1576 = vmatprep.subr.mxu0 0.0
        %1577 = vmatpush2.msra.mxu0 0.0
        %1578 = vmatprep.subr.mxu0 0.0
        %1579 = vmatpush2.msra.mxu0 0.0
        %1580 = vmatprep.subr.mxu0 0.0
        %1581 = vmatpush2.msra.mxu0 0.0
        %1582 = vmatprep.subr.mxu0 0.0
        %1583 = vmatpush2.msra.mxu0 0.0
        %1584 = vmatprep.subr.mxu0 0.0
        %1585 = vmatpush2.msra.mxu0 0.0
        %1586 = vmatprep.mubr.f32.mxu0 0.0
        %1587 = vmatmul.mubr.f32.gmra.mxu0 %v1501
        %v1588 = vpop.f32.mrf.mxu0
        %v1589 = vadd.f32 %v1521, %v1588
        %v1590 = vpop.f32.mrf.mxu0
        %1591 = vdwg.mxu0
        %v1592 = vadd.f32 %v478, %v1589
        %1593 = vadd.xlane.f32.xlu0 %v1592
        %v1594 = vpop.xlane.xlu0 %1593
        %v1595 = vmul.f32 %v1594, 0.03125
        %v1596 = vmul.f32 %v1592, %v1592
        %1597 = vadd.xlane.f32.xlu0 %v1596
        %v1598 = vpop.xlane.xlu0 %1597
        %v1599 = vmul.f32 %v1598, 0.03125
        %v1600 = vmul.f32 %v1595, %v1595
        %v1601 = vsub.f32 %v1599, %v1600
        %v1602 = vsub.f32 %v1592, %v1595
        %v1603 = vadd.f32 %v1601, 1e-05
        %v1604 = vrsqrt.pop %v1603
        %v1605 = vmul.f32 %v1602, %v1604
        %v1606 = vlaneseq
        %v1607 = vshrl.u32 %v1606, 7
        %v1608 = vsub.s32 2, %v1607
        %v1609 = vrot.slane %v453, %v1608
        %v1610 = vmul.f32 %v1605, %v1609
        %v1611 = vlaneseq
        %v1612 = vshrl.u32 %v1611, 7
        %v1613 = vsub.s32 3, %v1612
        %v1614 = vrot.slane %v453, %v1613
        %v1615 = vadd.f32 %v1610, %v1614
        %v1616 = vld [vmem:[#allocation13] sm:$0xff]
        %v1617 = vld [vmem:[#allocation13 + $0x8] sm:$0xff]
        %v1618 = vld [vmem:[#allocation13 + $0x10] sm:$0xff]
        %v1619 = vld [vmem:[#allocation13 + $0x18] sm:$0xff]
        %v1620 = vld [vmem:[#allocation13 + $0x20] sm:$0xff]
        %v1621 = vld [vmem:[#allocation13 + $0x28] sm:$0xff]
        %v1622 = vld [vmem:[#allocation13 + $0x30] sm:$0xff]
        %v1623 = vld [vmem:[#allocation13 + $0x38] sm:$0xff]
        %v1624 = vld [vmem:[#allocation13 + $0x40] sm:$0xff]
        %v1625 = vld [vmem:[#allocation13 + $0x48] sm:$0xff]
        %v1626 = vld [vmem:[#allocation13 + $0x50] sm:$0xff]
        %v1627 = vld [vmem:[#allocation13 + $0x58] sm:$0xff]
        %v1628 = vld [vmem:[#allocation13 + $0x60] sm:$0xff]
        %v1629 = vld [vmem:[#allocation13 + $0x68] sm:$0xff]
        %v1630 = vld [vmem:[#allocation13 + $0x70] sm:$0xff]
        %v1631 = vld [vmem:[#allocation13 + $0x78] sm:$0xff]
        %v1632 = vlaneseq
        %v1633 = vshrl.u32 %v1632, 7
        %v1634 = vsub.s32 1, %v1633
        %v1635 = vrot.slane %v455, %v1634
        %1636 = vmatprep.subr.mxu0 0.0
        %1637 = vmatpush1.msra.mxu0 %v1631
        %1638 = vmatprep.subr.mxu0 0.0
        %1639 = vmatpush1.msra.mxu0 %v1630
        %1640 = vmatprep.subr.mxu0 0.0
        %1641 = vmatpush1.msra.mxu0 %v1629
        %1642 = vmatprep.subr.mxu0 0.0
        %1643 = vmatpush1.msra.mxu0 %v1628
        %1644 = vmatprep.subr.mxu0 0.0
        %1645 = vmatpush1.msra.mxu0 %v1627
        %1646 = vmatprep.subr.mxu0 0.0
        %1647 = vmatpush1.msra.mxu0 %v1626
        %1648 = vmatprep.subr.mxu0 0.0
        %1649 = vmatpush1.msra.mxu0 %v1625
        %1650 = vmatprep.subr.mxu0 0.0
        %1651 = vmatpush1.msra.mxu0 %v1624
        %1652 = vmatprep.subr.mxu0 0.0
        %1653 = vmatpush1.msra.mxu0 %v1623
        %1654 = vmatprep.subr.mxu0 0.0
        %1655 = vmatpush1.msra.mxu0 %v1622
        %1656 = vmatprep.subr.mxu0 0.0
        %1657 = vmatpush1.msra.mxu0 %v1621
        %1658 = vmatprep.subr.mxu0 0.0
        %1659 = vmatpush1.msra.mxu0 %v1620
        %1660 = vmatprep.subr.mxu0 0.0
        %1661 = vmatpush1.msra.mxu0 %v1619
        %1662 = vmatprep.subr.mxu0 0.0
        %1663 = vmatpush1.msra.mxu0 %v1618
        %1664 = vmatprep.subr.mxu0 0.0
        %1665 = vmatpush1.msra.mxu0 %v1617
        %1666 = vmatprep.subr.mxu0 0.0
        %1667 = vmatpush1.msra.mxu0 %v1616
        %1668 = vmatprep.subr.mxu0 0.0
        %1669 = vmatpush2.msra.mxu0 0.0
        %1670 = vmatprep.subr.mxu0 0.0
        %1671 = vmatpush2.msra.mxu0 0.0
        %1672 = vmatprep.subr.mxu0 0.0
        %1673 = vmatpush2.msra.mxu0 0.0
        %1674 = vmatprep.subr.mxu0 0.0
        %1675 = vmatpush2.msra.mxu0 0.0
        %1676 = vmatprep.subr.mxu0 0.0
        %1677 = vmatpush2.msra.mxu0 0.0
        %1678 = vmatprep.subr.mxu0 0.0
        %1679 = vmatpush2.msra.mxu0 0.0
        %1680 = vmatprep.subr.mxu0 0.0
        %1681 = vmatpush2.msra.mxu0 0.0
        %1682 = vmatprep.subr.mxu0 0.0
        %1683 = vmatpush2.msra.mxu0 0.0
        %1684 = vmatprep.subr.mxu0 0.0
        %1685 = vmatpush2.msra.mxu0 0.0
        %1686 = vmatprep.subr.mxu0 0.0
        %1687 = vmatpush2.msra.mxu0 0.0
        %1688 = vmatprep.subr.mxu0 0.0
        %1689 = vmatpush2.msra.mxu0 0.0
        %1690 = vmatprep.subr.mxu0 0.0
        %1691 = vmatpush2.msra.mxu0 0.0
        %1692 = vmatprep.subr.mxu0 0.0
        %1693 = vmatpush2.msra.mxu0 0.0
        %1694 = vmatprep.subr.mxu0 0.0
        %1695 = vmatpush2.msra.mxu0 0.0
        %1696 = vmatprep.subr.mxu0 0.0
        %1697 = vmatpush2.msra.mxu0 0.0
        %1698 = vmatprep.subr.mxu0 0.0
        %1699 = vmatpush2.msra.mxu0 0.0
        %1700 = vmatprep.mubr.f32.mxu0 0.0
        %1701 = vmatmul.mubr.f32.gmra.mxu0 %v1615
        %v1702 = vpop.f32.mrf.mxu0
        %v1703 = vadd.f32 %v1635, %v1702
        %v1704 = vpop.f32.mrf.mxu0
        %1705 = vdwg.mxu0
        %v1706 = vmax.f32 %v1703, 0.0
        %s1707 = scalar_lea.vmem [#allocation13], 128
        %v1708 = vld [vmem:[%s1707] sm:$0xff]
        %v1709 = vld [vmem:[%s1707 + $0x8] sm:$0xff]
        %v1710 = vld [vmem:[%s1707 + $0x10] sm:$0xff]
        %v1711 = vld [vmem:[%s1707 + $0x18] sm:$0xff]
        %v1712 = vld [vmem:[%s1707 + $0x20] sm:$0xff]
        %v1713 = vld [vmem:[%s1707 + $0x28] sm:$0xff]
        %v1714 = vld [vmem:[%s1707 + $0x30] sm:$0xff]
        %v1715 = vld [vmem:[%s1707 + $0x38] sm:$0xff]
        %v1716 = vld [vmem:[%s1707 + $0x40] sm:$0xff]
        %v1717 = vld [vmem:[%s1707 + $0x48] sm:$0xff]
        %v1718 = vld [vmem:[%s1707 + $0x50] sm:$0xff]
        %v1719 = vld [vmem:[%s1707 + $0x58] sm:$0xff]
        %v1720 = vld [vmem:[%s1707 + $0x60] sm:$0xff]
        %v1721 = vld [vmem:[%s1707 + $0x68] sm:$0xff]
        %v1722 = vld [vmem:[%s1707 + $0x70] sm:$0xff]
        %v1723 = vld [vmem:[%s1707 + $0x78] sm:$0xff]
        %v1724 = vlaneseq
        %v1725 = vshrl.u32 %v1724, 7
        %v1726 = vsub.s32 2, %v1725
        %v1727 = vrot.slane %v455, %v1726
        %1728 = vmatprep.subr.mxu0 0.0
        %1729 = vmatpush1.msra.mxu0 %v1723
        %1730 = vmatprep.subr.mxu0 0.0
        %1731 = vmatpush1.msra.mxu0 %v1722
        %1732 = vmatprep.subr.mxu0 0.0
        %1733 = vmatpush1.msra.mxu0 %v1721
        %1734 = vmatprep.subr.mxu0 0.0
        %1735 = vmatpush1.msra.mxu0 %v1720
        %1736 = vmatprep.subr.mxu0 0.0
        %1737 = vmatpush1.msra.mxu0 %v1719
        %1738 = vmatprep.subr.mxu0 0.0
        %1739 = vmatpush1.msra.mxu0 %v1718
        %1740 = vmatprep.subr.mxu0 0.0
        %1741 = vmatpush1.msra.mxu0 %v1717
        %1742 = vmatprep.subr.mxu0 0.0
        %1743 = vmatpush1.msra.mxu0 %v1716
        %1744 = vmatprep.subr.mxu0 0.0
        %1745 = vmatpush1.msra.mxu0 %v1715
        %1746 = vmatprep.subr.mxu0 0.0
        %1747 = vmatpush1.msra.mxu0 %v1714
        %1748 = vmatprep.subr.mxu0 0.0
        %1749 = vmatpush1.msra.mxu0 %v1713
        %1750 = vmatprep.subr.mxu0 0.0
        %1751 = vmatpush1.msra.mxu0 %v1712
        %1752 = vmatprep.subr.mxu0 0.0
        %1753 = vmatpush1.msra.mxu0 %v1711
        %1754 = vmatprep.subr.mxu0 0.0
        %1755 = vmatpush1.msra.mxu0 %v1710
        %1756 = vmatprep.subr.mxu0 0.0
        %1757 = vmatpush1.msra.mxu0 %v1709
        %1758 = vmatprep.subr.mxu0 0.0
        %1759 = vmatpush1.msra.mxu0 %v1708
        %1760 = vmatprep.subr.mxu0 0.0
        %1761 = vmatpush2.msra.mxu0 0.0
        %1762 = vmatprep.subr.mxu0 0.0
        %1763 = vmatpush2.msra.mxu0 0.0
        %1764 = vmatprep.subr.mxu0 0.0
        %1765 = vmatpush2.msra.mxu0 0.0
        %1766 = vmatprep.subr.mxu0 0.0
        %1767 = vmatpush2.msra.mxu0 0.0
        %1768 = vmatprep.subr.mxu0 0.0
        %1769 = vmatpush2.msra.mxu0 0.0
        %1770 = vmatprep.subr.mxu0 0.0
        %1771 = vmatpush2.msra.mxu0 0.0
        %1772 = vmatprep.subr.mxu0 0.0
        %1773 = vmatpush2.msra.mxu0 0.0
        %1774 = vmatprep.subr.mxu0 0.0
        %1775 = vmatpush2.msra.mxu0 0.0
        %1776 = vmatprep.subr.mxu0 0.0
        %1777 = vmatpush2.msra.mxu0 0.0
        %1778 = vmatprep.subr.mxu0 0.0
        %1779 = vmatpush2.msra.mxu0 0.0
        %1780 = vmatprep.subr.mxu0 0.0
        %1781 = vmatpush2.msra.mxu0 0.0
        %1782 = vmatprep.subr.mxu0 0.0
        %1783 = vmatpush2.msra.mxu0 0.0
        %1784 = vmatprep.subr.mxu0 0.0
        %1785 = vmatpush2.msra.mxu0 0.0
        %1786 = vmatprep.subr.mxu0 0.0
        %1787 = vmatpush2.msra.mxu0 0.0
        %1788 = vmatprep.subr.mxu0 0.0
        %1789 = vmatpush2.msra.mxu0 0.0
        %1790 = vmatprep.subr.mxu0 0.0
        %1791 = vmatpush2.msra.mxu0 0.0
        %1792 = vmatprep.mubr.f32.mxu0 0.0
        %1793 = vmatmul.mubr.f32.gmra.mxu0 %v1706
        %v1794 = vpop.f32.mrf.mxu0
        %v1795 = vadd.f32 %v1727, %v1794
        %v1796 = vpop.f32.mrf.mxu0
        %1797 = vdwg.mxu0
        %v1798 = vadd.f32 %v1795, %v1615
        %1799 = vst [vmem:[%s451] sm:$0xff] %v1798
        %s1800 = sand.u32 %s238, 1
        %s1801 = scalar_lea.sflag [#allocation4], %s1800
        %s1802 = sand.u32 %s238, 1
        %s1803 = smul.addr %s1802, 8
        %s1804 = scalar_lea.vmem [#allocation14], %s1803
        // Predicated region
        $region85: #{tpu_custom_call.1} parent=55 // pred_check
          %p1805 = pneg %p248
        $region86: #{tpu_custom_call.1} parent=55 // pred_check_branch
          %1807 = sbr.rel (%p1805) target = $region88
        $region87: #{tpu_custom_call.1} parent=55 // pred_region
          %s1809 = ssub.s32 128, 128
          %1810 = vsyncadd %s1801, %s1809
          %s1811 = smul.addr %s31, 128
          %s1812 = scalar_lea.hbm %s9, %s1811
          %s1814 = sshll.u32 %s1804, 4
          %s1815 = int_to_ptr.vmem [resolvable:$true] %s1814
          %1817 = dma.vmem_to_hbm [thread:$0]  %s1815, 128, %s1812, %s1801
        $region88: #{tpu_custom_call.1} parent=55 // pred_fallthru
          _
      $region56: #{tpu_custom_call.1} parent=5 // pred_fallthru
        _
      %p1818 = scmp.le.s32.totalorder 2, %s26
      // Predicated region
      $region89: #{tpu_custom_call.1} parent=5 // pred_check
        %p1819 = pneg %p1818
      $region90: #{tpu_custom_call.1} parent=5 // pred_check_branch
        %1821 = sbr.rel (%p1819) target = $region92
      $region91: #{tpu_custom_call.1} parent=5 // pred_region
        %s1822 = ssub.s32 %s26, 2
        // Predicated region
        $region93: #{tpu_custom_call.1} parent=91 // pred_check
          %p1823 = pneg %p254
        $region94: #{tpu_custom_call.1} parent=91 // pred_check_branch
          %1825 = sbr.rel (%p1823) target = $region96
        $region95: #{tpu_custom_call.1} parent=91 // pred_region
          %s1826 = sand.u32 %s239, 1
          %s1827 = scalar_lea.sflag [#allocation4], %s1826
          %s1828 = sand.u32 %s239, 1
          %s1829 = smul.addr %s1828, 8
          %s1830 = scalar_lea.vmem [#allocation14], %s1829
          %1831 = dma.done %s1827, 128
        $region96: #{tpu_custom_call.1} parent=91 // pred_fallthru
          _
      $region92: #{tpu_custom_call.1} parent=5 // pred_fallthru
        _
    $region6: #{tpu_custom_call.1} parent=1 // loop_footer
      %s30 = sadd.s32 1, %s26
    $region7: #{tpu_custom_call.1} parent=1 // loop_footer_branch
      %25 = sbr.rel target = $region3
    $region8: #{tpu_custom_call.1} parent=1 // loop_exit
      _
    %1832 = vsyncpa [#allocation3], 1
    %s1833 = scalar_lea.sflag [#allocation3], 1
    %1834 = vsyncpa %s1833, 1
    %1835 = vsyncpa [#allocation6], 1
    %s1836 = scalar_lea.sflag [#allocation6], 1
    %1837 = vsyncpa %s1836, 1
    %1838 = vsyncpa [#allocation9], 1
    %1839 = vsyncpa [#allocation12], 1
    %1840 = vsyncpa [#allocation4], 1
    %s1841 = scalar_lea.sflag [#allocation4], 1
    %1842 = vsyncpa %s1841, 1

</llo_original>
